<compile_context>
chip_gen: v7x
topology: tpu7x:2x2x1
jax: 0.10.0
libtpu: 0.0.40
codegen_flags: <defaults>
</compile_context>

<pallas_src>
import jax
import jax.numpy as jnp
from jax import lax
from jax.experimental import pallas as pl
from jax.experimental.pallas import tpu as pltpu


def _round_up(n, m):
    return ((n + m - 1) // m) * m


def _bf16_operands_ok():
    """bf16 MXU operands are native on v6e/v7x; keep f32 on v5e and older."""
    try:
        kind = jax.devices()[0].device_kind.lower()
    except Exception:
        return False
    return not any(s in kind for s in ("v2", "v3", "v4", "v5"))


# ------------------------- fused GRU + MLP kernel ------------------------- #

def seq2mlp_kernel(lens_ref, gi_ref, w_hh_ref, b_hh_n_ref,
                   w1_ref, b1_ref, w2_ref, b2_ref,
                   out_ref, h_ref):
    tc = pl.program_id(1)
    n_tc = pl.num_programs(1)
    Tc, Bb, G3 = gi_ref.shape
    H = G3 // 3

    # First time-chunk for this batch block: reset the carried hidden state.
    @pl.when(tc == 0)
    def _():
        h_ref[...] = jnp.zeros_like(h_ref)

    lens = lens_ref[...]                                   # (Bb, 1) int32
    w_hh = w_hh_ref[...]                                   # (H, 3H), MXU operand
    b_hh_n = b_hh_n_ref[...].astype(jnp.float32)           # (1, H)
    t0 = tc * Tc                                           # absolute time offset

    def step(t, h_prev):
        # Precomputed input projection for timestep t0+t: includes b_ih and the
        # folded b_hh_r / b_hh_z recurrent biases.
        gi_t = gi_ref[t].astype(jnp.float32)               # (Bb, 3H)

        # Single fused recurrent matmul: 3H <= 128 lanes => one MXU push/pop.
        hg = jnp.dot(h_prev.astype(w_hh.dtype), w_hh,
                     preferred_element_type=jnp.float32)   # (Bb, 3H)

        r = jax.nn.sigmoid(gi_t[:, 0:H] + hg[:, 0:H])          # b_hr folded in gi
        z = jax.nn.sigmoid(gi_t[:, H:2 * H] + hg[:, H:2 * H])  # b_hz folded in gi
        n = jnp.tanh(gi_t[:, 2 * H:] + r * (hg[:, 2 * H:] + b_hh_n))
        h_new = (1.0 - z) * n + z * h_prev

        # Emulate pack_padded_sequence: padded timesteps keep h unchanged, so
        # the final hidden equals the hidden at each sequence's true length.
        valid = (t0 + t) < lens                            # (Bb, 1) bool
        return jnp.where(valid, h_new, h_prev)

    # Full unroll for short chunks; partial unroll keeps LLO visibility without
    # blowing up instruction memory for long chunks.
    unroll = True if Tc <= 16 else 8
    h = lax.fori_loop(0, Tc, step, h_ref[...], unroll=unroll)
    h_ref[...] = h                                         # carry across chunks

    # Fused MLP head on the last time-chunk: Linear -> ReLU -> Linear,
    # lane-padded so the output store is lane-dense.
    @pl.when(tc == n_tc - 1)
    def _():
        z1 = jnp.dot(h.astype(w1_ref.dtype), w1_ref[...],
                     preferred_element_type=jnp.float32) + b1_ref[...]
        a1 = jnp.maximum(z1, 0.0)
        out_ref[...] = jnp.dot(a1.astype(w2_ref.dtype), w2_ref[...],
                               preferred_element_type=jnp.float32) + b2_ref[...]


def run_seq2mlp_kernel(lens_2d, gi, w_hh, b_hh_n, w1_p, b1_p, w2_p, b2_p,
                       *, block_b, time_chunk):
    T_pad, B_pad, G3 = gi.shape
    H = G3 // 3
    M_pad = w1_p.shape[1]
    O_pad = w2_p.shape[1]
    nb = B_pad // block_b
    ntc = T_pad // time_chunk

    return pl.pallas_call(
        seq2mlp_kernel,
        out_shape=jax.ShapeDtypeStruct((B_pad, O_pad), jnp.float32),
        grid_spec=pltpu.PrefetchScalarGridSpec(
            num_scalar_prefetch=0,
            grid=(nb, ntc),                               # batch-parallel, time-serial
            in_specs=[
                pl.BlockSpec((block_b, 1), lambda bi, tc: (bi, 0)),          # lengths
                pl.BlockSpec((time_chunk, block_b, G3),
                             lambda bi, tc: (tc, bi, 0)),                    # gi chunk
                pl.BlockSpec((H, G3), lambda bi, tc: (0, 0)),                # W_hh (fused r|z|n)
                pl.BlockSpec((1, H), lambda bi, tc: (0, 0)),                 # b_hh_n
                pl.BlockSpec((H, M_pad), lambda bi, tc: (0, 0)),             # MLP W1 (padded)
                pl.BlockSpec((1, M_pad), lambda bi, tc: (0, 0)),             # MLP b1 (padded)
                pl.BlockSpec((M_pad, O_pad), lambda bi, tc: (0, 0)),         # MLP W2 (padded)
                pl.BlockSpec((1, O_pad), lambda bi, tc: (0, 0)),             # MLP b2 (padded)
            ],
            out_specs=pl.BlockSpec((block_b, O_pad), lambda bi, tc: (bi, 0)),
            scratch_shapes=[pltpu.VMEM((block_b, H), jnp.float32)],          # carried h
        ),
        compiler_params=pltpu.CompilerParams(
            dimension_semantics=("parallel", "arbitrary")),
    )(lens_2d, gi, w_hh, b_hh_n, w1_p, b1_p, w2_p, b2_p)


# ------------------------------ Seq2MLP forward ---------------------------- #

def seq2mlp_forward(params, input_variable, input_lengths, teacher_forcing_ratio=0,
                    *, time_chunk=64, use_bf16_operands=None):
    tokens = input_variable[0]            # (B, T) int32 token ids
    lengths = input_lengths[0]            # (B,)   int32 valid lengths
    B, T = tokens.shape
    G3 = params["w_ih"].shape[1]
    H = G3 // 3
    M = params["mlp_w1"].shape[1]
    O = params["mlp_w2"].shape[1]

    if use_bf16_operands is None:
        use_bf16_operands = _bf16_operands_ok()
    op_dtype = jnp.bfloat16 if use_bf16_operands else jnp.float32

    # Embedding lookup (XLA glue): (B, T) -> (B, T, E)
    emb = jnp.take(params["embedding"], tokens, axis=0).astype(jnp.float32)

    # Hoisted, time-invariant input projection for all timesteps, with b_ih
    # plus the recurrent r/z biases folded in (they sit outside the
    # r-multiplication); b_hh_n must stay inside the kernel.
    b_hh = params["b_hh"]
    bias_fold = params["b_ih"] + jnp.concatenate(
        [b_hh[:, :2 * H], jnp.zeros((1, H), jnp.float32)], axis=1)
    gi_all = jnp.einsum("bte,eg->btg", emb, params["w_ih"]) + bias_fold  # (B,T,3H)
    gi_all = jnp.transpose(gi_all, (1, 0, 2))                            # (T,B,3H)

    # Time chunking (gi streamed chunk-by-chunk; padded steps masked by lens).
    Tc = min(time_chunk, T)
    T_pad = _round_up(T, Tc)

    # Batch tiling: small batches stay one block; larger batches split into two
    # 'parallel' blocks so both v7x TensorCores get work.
    if B <= 16:
        B_pad = _round_up(B, 8)
        block_b = B_pad
    else:
        B_pad = _round_up(B, 32)
        block_b = B_pad // 2

    gi_all = jnp.pad(gi_all, ((0, T_pad - T), (0, B_pad - B), (0, 0)))
    lens_2d = jnp.pad(lengths.astype(jnp.int32), (0, B_pad - B)).reshape(B_pad, 1)

    # Zero-pad MLP lane dims to multiples of 128 (lane-dense matmuls + store);
    # true O columns sliced back out below (zeros survive ReLU harmlessly).
    M_pad = _round_up(M, 128)
    O_pad = _round_up(O, 128)
    w1_p = jnp.pad(params["mlp_w1"], ((0, 0), (0, M_pad - M))).astype(op_dtype)
    b1_p = jnp.pad(params["mlp_b1"], ((0, 0), (0, M_pad - M)))
    w2_p = jnp.pad(params["mlp_w2"], ((0, M_pad - M), (0, O_pad - O))).astype(op_dtype)
    b2_p = jnp.pad(params["mlp_b2"], ((0, 0), (0, O_pad - O)))

    out_pad = run_seq2mlp_kernel(
        lens_2d, gi_all.astype(op_dtype),
        params["w_hh"].astype(op_dtype),        # fused (H, 3H) recurrent weights
        b_hh[:, 2 * H:],                        # b_hh_n only
        w1_p, b1_p, w2_p, b2_p,
        block_b=block_b, time_chunk=Tc)         # (B_pad, O_pad)

    out = out_pad[:B, :O]                       # (B, O)

    # encoder_hidden in PyTorch is (num_layers=1, B, H); MLP keeps the leading
    # axis, so the result is (1, B, O).
    return out[None, :, :]


# ----------------------------------- main ---------------------------------- #

if __name__ == "__main__":
    V, E, H = 32, 16, 32          # vocab, embedding dim, GRU hidden
    M, O = 64, 10                 # MLP hidden, MLP output
    B, T = 8, 8                   # batch, sequence length

    key = jax.random.PRNGKey(0)
    keys = jax.random.split(key, 10)

    params = {
        "embedding": jax.random.normal(keys[0], (V, E), jnp.float32) * 0.1,
        # GRU weights stored pre-transposed: x @ W_ih, h @ W_hh (gate order r,z,n)
        "w_ih": jax.random.normal(keys[1], (E, 3 * H), jnp.float32) * 0.1,
        "w_hh": jax.random.normal(keys[2], (H, 3 * H), jnp.float32) * 0.1,
        "b_ih": jax.random.normal(keys[3], (1, 3 * H), jnp.float32) * 0.1,
        "b_hh": jax.random.normal(keys[4], (1, 3 * H), jnp.float32) * 0.1,
        "mlp_w1": jax.random.normal(keys[5], (H, M), jnp.float32) * 0.1,
        "mlp_b1": jax.random.normal(keys[6], (1, M), jnp.float32) * 0.1,
        "mlp_w2": jax.random.normal(keys[7], (M, O), jnp.float32) * 0.1,
        "mlp_b2": jax.random.normal(keys[8], (1, O), jnp.float32) * 0.1,
    }

    tokens = jax.random.randint(keys[9], (B, T), 0, V, dtype=jnp.int32)
    lengths = jnp.array([8, 7, 6, 8, 5, 8, 4, 8], dtype=jnp.int32)

    # Seq2MLP.forward signature: (input_variable, input_lengths, ...)
    result = seq2mlp_forward(params, (tokens,), (lengths,))
    result = jax.block_until_ready(result)

    assert result.shape == (1, B, O)
    print("KERNEL_OK")
</pallas_src>

<mosaic_0001>
module attributes {stable_mosaic.version = 11 : i64} {
  func.func @seq2mlp_kernel(%arg0: i32, %arg1: i32, %arg2: memref<8x1xi32, #tpu.memory_space<vmem>>, %arg3: memref<8x8x96xbf16, #tpu.memory_space<vmem>>, %arg4: memref<32x96xbf16, #tpu.memory_space<vmem>>, %arg5: memref<1x32xf32, #tpu.memory_space<vmem>>, %arg6: memref<32x128xbf16, #tpu.memory_space<vmem>>, %arg7: memref<1x128xf32, #tpu.memory_space<vmem>>, %arg8: memref<128x128xbf16, #tpu.memory_space<vmem>>, %arg9: memref<1x128xf32, #tpu.memory_space<vmem>>, %arg10: memref<8x128xf32, #tpu.memory_space<vmem>>, %arg11: memref<8x32xf32, #tpu.memory_space<vmem>>) attributes {dimension_semantics = [#tpu.dimension_semantics<parallel>, #tpu.dimension_semantics<arbitrary>], iteration_bounds = array<i64: 1, 1>, scalar_prefetch = 0 : i64, scratch_operands = 1 : i64, tpu.core_type = #tpu.core_type<tc>, window_params = [{transform_indices = @transform_0, window_bounds = array<i64: 8, 1>}, {transform_indices = @transform_1, window_bounds = array<i64: 8, 8, 96>}, {pipeline_mode = #tpu.pipeline_mode<synchronous>, transform_indices = @transform_2, window_bounds = array<i64: 32, 96>}, {pipeline_mode = #tpu.pipeline_mode<synchronous>, transform_indices = @transform_3, window_bounds = array<i64: 1, 32>}, {pipeline_mode = #tpu.pipeline_mode<synchronous>, transform_indices = @transform_4, window_bounds = array<i64: 32, 128>}, {pipeline_mode = #tpu.pipeline_mode<synchronous>, transform_indices = @transform_5, window_bounds = array<i64: 1, 128>}, {pipeline_mode = #tpu.pipeline_mode<synchronous>, transform_indices = @transform_6, window_bounds = array<i64: 128, 128>}, {pipeline_mode = #tpu.pipeline_mode<synchronous>, transform_indices = @transform_7, window_bounds = array<i64: 1, 128>}, {transform_indices = @transform_8, window_bounds = array<i64: 8, 128>}]} {
    %c0_i32 = arith.constant 0 : i32
    %0 = arith.cmpi eq, %arg1, %c0_i32 : i32
    %1 = arith.extui %0 : i1 to i32
    %c0_i32_0 = arith.constant 0 : i32
    %2 = arith.cmpi ne, %1, %c0_i32_0 : i32
    scf.if %2 {
      %cst_61 = arith.constant 0.000000e+00 : f32
      %332 = vector.broadcast %cst_61 : f32 to vector<8x32xf32>
      %c0_62 = arith.constant 0 : index
      %c0_63 = arith.constant 0 : index
      %333 = vector.load %arg11[%c0_62, %c0_63] : memref<8x32xf32, #tpu.memory_space<vmem>>, vector<8x32xf32>
      tpu.vector_store %arg11[%c0_62, %c0_63], %332 {strides = array<i32>} : memref<8x32xf32, #tpu.memory_space<vmem>>, vector<8x32xf32>,
    } else {
    }
    %c0 = arith.constant 0 : index
    %c0_1 = arith.constant 0 : index
    %3 = vector.load %arg2[%c0, %c0_1] : memref<8x1xi32, #tpu.memory_space<vmem>>, vector<8x1xi32>
    %c0_2 = arith.constant 0 : index
    %c0_3 = arith.constant 0 : index
    %4 = vector.load %arg4[%c0_2, %c0_3] : memref<32x96xbf16, #tpu.memory_space<vmem>>, vector<32x96xbf16>
    %c0_4 = arith.constant 0 : index
    %c0_5 = arith.constant 0 : index
    %5 = vector.load %arg5[%c0_4, %c0_5] : memref<1x32xf32, #tpu.memory_space<vmem>>, vector<1x32xf32>
    %c8_i32 = arith.constant 8 : i32
    %6 = arith.muli %arg1, %c8_i32 : i32
    %c0_6 = arith.constant 0 : index
    %c0_7 = arith.constant 0 : index
    %7 = vector.load %arg11[%c0_6, %c0_7] : memref<8x32xf32, #tpu.memory_space<vmem>>, vector<8x32xf32>
    %c0_i32_8 = arith.constant 0 : i32
    %8 = arith.index_cast %c0_i32_8 : i32 to index
    %c0_9 = arith.constant 0 : index
    %c0_10 = arith.constant 0 : index
    %9 = vector.load %arg3[%8, %c0_9, %c0_10] : memref<8x8x96xbf16, #tpu.memory_space<vmem>>, vector<1x8x96xbf16>
    %10 = vector.shape_cast %9 : vector<1x8x96xbf16> to vector<8x96xbf16>
    %11 = arith.extf %10 : vector<8x96xbf16> to vector<8x96xf32>
    %12 = arith.truncf %7 : vector<8x32xf32> to vector<8x32xbf16>
    %cst = arith.constant dense<0.000000e+00> : vector<8x96xf32>
    %13 = tpu.matmul %12, %4, %cst {dimension_numbers = #tpu.dot_dimension_numbers<[1], [0], [0], [1], [0, 0, 1, 1], [], []>} : vector<8x32xbf16>, vector<32x96xbf16>, vector<8x96xf32> -> vector<8x96xf32>
    %14 = vector.extract_strided_slice %11 {offsets = [0, 0], sizes = [8, 32], strides = [1, 1]} : vector<8x96xf32> to vector<8x32xf32>
    %15 = vector.extract_strided_slice %13 {offsets = [0, 0], sizes = [8, 32], strides = [1, 1]} : vector<8x96xf32> to vector<8x32xf32>
    %16 = arith.addf %14, %15 : vector<8x32xf32>
    %17 = arith.negf %16 : vector<8x32xf32>
    %18 = math.exp %17 : vector<8x32xf32>
    %cst_11 = arith.constant 1.000000e+00 : f32
    %19 = vector.broadcast %cst_11 : f32 to vector<8x32xf32>
    %20 = arith.addf %19, %18 : vector<8x32xf32>
    %21 = arith.divf %19, %20 : vector<8x32xf32>
    %22 = vector.extract_strided_slice %11 {offsets = [0, 32], sizes = [8, 32], strides = [1, 1]} : vector<8x96xf32> to vector<8x32xf32>
    %23 = vector.extract_strided_slice %13 {offsets = [0, 32], sizes = [8, 32], strides = [1, 1]} : vector<8x96xf32> to vector<8x32xf32>
    %24 = arith.addf %22, %23 : vector<8x32xf32>
    %25 = arith.negf %24 : vector<8x32xf32>
    %26 = math.exp %25 : vector<8x32xf32>
    %cst_12 = arith.constant 1.000000e+00 : f32
    %27 = vector.broadcast %cst_12 : f32 to vector<8x32xf32>
    %28 = arith.addf %27, %26 : vector<8x32xf32>
    %29 = arith.divf %27, %28 : vector<8x32xf32>
    %30 = vector.extract_strided_slice %11 {offsets = [0, 64], sizes = [8, 32], strides = [1, 1]} : vector<8x96xf32> to vector<8x32xf32>
    %31 = vector.extract_strided_slice %13 {offsets = [0, 64], sizes = [8, 32], strides = [1, 1]} : vector<8x96xf32> to vector<8x32xf32>
    %32 = vector.broadcast %5 : vector<1x32xf32> to vector<8x32xf32>
    %33 = arith.addf %31, %32 : vector<8x32xf32>
    %34 = arith.mulf %21, %33 : vector<8x32xf32>
    %35 = arith.addf %30, %34 : vector<8x32xf32>
    %36 = math.tanh %35 : vector<8x32xf32>
    %cst_13 = arith.constant 1.000000e+00 : f32
    %37 = vector.broadcast %cst_13 : f32 to vector<8x32xf32>
    %38 = arith.subf %37, %29 : vector<8x32xf32>
    %39 = arith.mulf %38, %36 : vector<8x32xf32>
    %40 = arith.mulf %29, %7 : vector<8x32xf32>
    %41 = arith.addf %39, %40 : vector<8x32xf32>
    %42 = arith.addi %6, %c0_i32_8 : i32
    %43 = vector.broadcast %42 : i32 to vector<8x1xi32>
    %44 = arith.cmpi slt, %43, %3 : vector<8x1xi32>
    %45 = vector.shape_cast %44 : vector<8x1xi1> to vector<8x1xi1>
    %46 = vector.broadcast %45 : vector<8x1xi1> to vector<8x32xi1>
    %47 = arith.select %46, %41, %7 : vector<8x32xi1>, vector<8x32xf32>
    %c1_i32 = arith.constant 1 : i32
    %48 = arith.index_cast %c1_i32 : i32 to index
    %c0_14 = arith.constant 0 : index
    %c0_15 = arith.constant 0 : index
    %49 = vector.load %arg3[%48, %c0_14, %c0_15] : memref<8x8x96xbf16, #tpu.memory_space<vmem>>, vector<1x8x96xbf16>
    %50 = vector.shape_cast %49 : vector<1x8x96xbf16> to vector<8x96xbf16>
    %51 = arith.extf %50 : vector<8x96xbf16> to vector<8x96xf32>
    %52 = arith.truncf %47 : vector<8x32xf32> to vector<8x32xbf16>
    %cst_16 = arith.constant dense<0.000000e+00> : vector<8x96xf32>
    %53 = tpu.matmul %52, %4, %cst_16 {dimension_numbers = #tpu.dot_dimension_numbers<[1], [0], [0], [1], [0, 0, 1, 1], [], []>} : vector<8x32xbf16>, vector<32x96xbf16>, vector<8x96xf32> -> vector<8x96xf32>
    %54 = vector.extract_strided_slice %51 {offsets = [0, 0], sizes = [8, 32], strides = [1, 1]} : vector<8x96xf32> to vector<8x32xf32>
    %55 = vector.extract_strided_slice %53 {offsets = [0, 0], sizes = [8, 32], strides = [1, 1]} : vector<8x96xf32> to vector<8x32xf32>
    %56 = arith.addf %54, %55 : vector<8x32xf32>
    %57 = arith.negf %56 : vector<8x32xf32>
    %58 = math.exp %57 : vector<8x32xf32>
    %cst_17 = arith.constant 1.000000e+00 : f32
    %59 = vector.broadcast %cst_17 : f32 to vector<8x32xf32>
    %60 = arith.addf %59, %58 : vector<8x32xf32>
    %61 = arith.divf %59, %60 : vector<8x32xf32>
    %62 = vector.extract_strided_slice %51 {offsets = [0, 32], sizes = [8, 32], strides = [1, 1]} : vector<8x96xf32> to vector<8x32xf32>
    %63 = vector.extract_strided_slice %53 {offsets = [0, 32], sizes = [8, 32], strides = [1, 1]} : vector<8x96xf32> to vector<8x32xf32>
    %64 = arith.addf %62, %63 : vector<8x32xf32>
    %65 = arith.negf %64 : vector<8x32xf32>
    %66 = math.exp %65 : vector<8x32xf32>
    %cst_18 = arith.constant 1.000000e+00 : f32
    %67 = vector.broadcast %cst_18 : f32 to vector<8x32xf32>
    %68 = arith.addf %67, %66 : vector<8x32xf32>
    %69 = arith.divf %67, %68 : vector<8x32xf32>
    %70 = vector.extract_strided_slice %51 {offsets = [0, 64], sizes = [8, 32], strides = [1, 1]} : vector<8x96xf32> to vector<8x32xf32>
    %71 = vector.extract_strided_slice %53 {offsets = [0, 64], sizes = [8, 32], strides = [1, 1]} : vector<8x96xf32> to vector<8x32xf32>
    %72 = vector.broadcast %5 : vector<1x32xf32> to vector<8x32xf32>
    %73 = arith.addf %71, %72 : vector<8x32xf32>
    %74 = arith.mulf %61, %73 : vector<8x32xf32>
    %75 = arith.addf %70, %74 : vector<8x32xf32>
    %76 = math.tanh %75 : vector<8x32xf32>
    %cst_19 = arith.constant 1.000000e+00 : f32
    %77 = vector.broadcast %cst_19 : f32 to vector<8x32xf32>
    %78 = arith.subf %77, %69 : vector<8x32xf32>
    %79 = arith.mulf %78, %76 : vector<8x32xf32>
    %80 = arith.mulf %69, %47 : vector<8x32xf32>
    %81 = arith.addf %79, %80 : vector<8x32xf32>
    %82 = arith.addi %6, %c1_i32 : i32
    %83 = vector.broadcast %82 : i32 to vector<8x1xi32>
    %84 = arith.cmpi slt, %83, %3 : vector<8x1xi32>
    %85 = vector.shape_cast %84 : vector<8x1xi1> to vector<8x1xi1>
    %86 = vector.broadcast %85 : vector<8x1xi1> to vector<8x32xi1>
    %87 = arith.select %86, %81, %47 : vector<8x32xi1>, vector<8x32xf32>
    %c2_i32 = arith.constant 2 : i32
    %88 = arith.index_cast %c2_i32 : i32 to index
    %c0_20 = arith.constant 0 : index
    %c0_21 = arith.constant 0 : index
    %89 = vector.load %arg3[%88, %c0_20, %c0_21] : memref<8x8x96xbf16, #tpu.memory_space<vmem>>, vector<1x8x96xbf16>
    %90 = vector.shape_cast %89 : vector<1x8x96xbf16> to vector<8x96xbf16>
    %91 = arith.extf %90 : vector<8x96xbf16> to vector<8x96xf32>
    %92 = arith.truncf %87 : vector<8x32xf32> to vector<8x32xbf16>
    %cst_22 = arith.constant dense<0.000000e+00> : vector<8x96xf32>
    %93 = tpu.matmul %92, %4, %cst_22 {dimension_numbers = #tpu.dot_dimension_numbers<[1], [0], [0], [1], [0, 0, 1, 1], [], []>} : vector<8x32xbf16>, vector<32x96xbf16>, vector<8x96xf32> -> vector<8x96xf32>
    %94 = vector.extract_strided_slice %91 {offsets = [0, 0], sizes = [8, 32], strides = [1, 1]} : vector<8x96xf32> to vector<8x32xf32>
    %95 = vector.extract_strided_slice %93 {offsets = [0, 0], sizes = [8, 32], strides = [1, 1]} : vector<8x96xf32> to vector<8x32xf32>
    %96 = arith.addf %94, %95 : vector<8x32xf32>
    %97 = arith.negf %96 : vector<8x32xf32>
    %98 = math.exp %97 : vector<8x32xf32>
    %cst_23 = arith.constant 1.000000e+00 : f32
    %99 = vector.broadcast %cst_23 : f32 to vector<8x32xf32>
    %100 = arith.addf %99, %98 : vector<8x32xf32>
    %101 = arith.divf %99, %100 : vector<8x32xf32>
    %102 = vector.extract_strided_slice %91 {offsets = [0, 32], sizes = [8, 32], strides = [1, 1]} : vector<8x96xf32> to vector<8x32xf32>
    %103 = vector.extract_strided_slice %93 {offsets = [0, 32], sizes = [8, 32], strides = [1, 1]} : vector<8x96xf32> to vector<8x32xf32>
    %104 = arith.addf %102, %103 : vector<8x32xf32>
    %105 = arith.negf %104 : vector<8x32xf32>
    %106 = math.exp %105 : vector<8x32xf32>
    %cst_24 = arith.constant 1.000000e+00 : f32
    %107 = vector.broadcast %cst_24 : f32 to vector<8x32xf32>
    %108 = arith.addf %107, %106 : vector<8x32xf32>
    %109 = arith.divf %107, %108 : vector<8x32xf32>
    %110 = vector.extract_strided_slice %91 {offsets = [0, 64], sizes = [8, 32], strides = [1, 1]} : vector<8x96xf32> to vector<8x32xf32>
    %111 = vector.extract_strided_slice %93 {offsets = [0, 64], sizes = [8, 32], strides = [1, 1]} : vector<8x96xf32> to vector<8x32xf32>
    %112 = vector.broadcast %5 : vector<1x32xf32> to vector<8x32xf32>
    %113 = arith.addf %111, %112 : vector<8x32xf32>
    %114 = arith.mulf %101, %113 : vector<8x32xf32>
    %115 = arith.addf %110, %114 : vector<8x32xf32>
    %116 = math.tanh %115 : vector<8x32xf32>
    %cst_25 = arith.constant 1.000000e+00 : f32
    %117 = vector.broadcast %cst_25 : f32 to vector<8x32xf32>
    %118 = arith.subf %117, %109 : vector<8x32xf32>
    %119 = arith.mulf %118, %116 : vector<8x32xf32>
    %120 = arith.mulf %109, %87 : vector<8x32xf32>
    %121 = arith.addf %119, %120 : vector<8x32xf32>
    %122 = arith.addi %6, %c2_i32 : i32
    %123 = vector.broadcast %122 : i32 to vector<8x1xi32>
    %124 = arith.cmpi slt, %123, %3 : vector<8x1xi32>
    %125 = vector.shape_cast %124 : vector<8x1xi1> to vector<8x1xi1>
    %126 = vector.broadcast %125 : vector<8x1xi1> to vector<8x32xi1>
    %127 = arith.select %126, %121, %87 : vector<8x32xi1>, vector<8x32xf32>
    %c3_i32 = arith.constant 3 : i32
    %128 = arith.index_cast %c3_i32 : i32 to index
    %c0_26 = arith.constant 0 : index
    %c0_27 = arith.constant 0 : index
    %129 = vector.load %arg3[%128, %c0_26, %c0_27] : memref<8x8x96xbf16, #tpu.memory_space<vmem>>, vector<1x8x96xbf16>
    %130 = vector.shape_cast %129 : vector<1x8x96xbf16> to vector<8x96xbf16>
    %131 = arith.extf %130 : vector<8x96xbf16> to vector<8x96xf32>
    %132 = arith.truncf %127 : vector<8x32xf32> to vector<8x32xbf16>
    %cst_28 = arith.constant dense<0.000000e+00> : vector<8x96xf32>
    %133 = tpu.matmul %132, %4, %cst_28 {dimension_numbers = #tpu.dot_dimension_numbers<[1], [0], [0], [1], [0, 0, 1, 1], [], []>} : vector<8x32xbf16>, vector<32x96xbf16>, vector<8x96xf32> -> vector<8x96xf32>
    %134 = vector.extract_strided_slice %131 {offsets = [0, 0], sizes = [8, 32], strides = [1, 1]} : vector<8x96xf32> to vector<8x32xf32>
    %135 = vector.extract_strided_slice %133 {offsets = [0, 0], sizes = [8, 32], strides = [1, 1]} : vector<8x96xf32> to vector<8x32xf32>
    %136 = arith.addf %134, %135 : vector<8x32xf32>
    %137 = arith.negf %136 : vector<8x32xf32>
    %138 = math.exp %137 : vector<8x32xf32>
    %cst_29 = arith.constant 1.000000e+00 : f32
    %139 = vector.broadcast %cst_29 : f32 to vector<8x32xf32>
    %140 = arith.addf %139, %138 : vector<8x32xf32>
    %141 = arith.divf %139, %140 : vector<8x32xf32>
    %142 = vector.extract_strided_slice %131 {offsets = [0, 32], sizes = [8, 32], strides = [1, 1]} : vector<8x96xf32> to vector<8x32xf32>
    %143 = vector.extract_strided_slice %133 {offsets = [0, 32], sizes = [8, 32], strides = [1, 1]} : vector<8x96xf32> to vector<8x32xf32>
    %144 = arith.addf %142, %143 : vector<8x32xf32>
    %145 = arith.negf %144 : vector<8x32xf32>
    %146 = math.exp %145 : vector<8x32xf32>
    %cst_30 = arith.constant 1.000000e+00 : f32
    %147 = vector.broadcast %cst_30 : f32 to vector<8x32xf32>
    %148 = arith.addf %147, %146 : vector<8x32xf32>
    %149 = arith.divf %147, %148 : vector<8x32xf32>
    %150 = vector.extract_strided_slice %131 {offsets = [0, 64], sizes = [8, 32], strides = [1, 1]} : vector<8x96xf32> to vector<8x32xf32>
    %151 = vector.extract_strided_slice %133 {offsets = [0, 64], sizes = [8, 32], strides = [1, 1]} : vector<8x96xf32> to vector<8x32xf32>
    %152 = vector.broadcast %5 : vector<1x32xf32> to vector<8x32xf32>
    %153 = arith.addf %151, %152 : vector<8x32xf32>
    %154 = arith.mulf %141, %153 : vector<8x32xf32>
    %155 = arith.addf %150, %154 : vector<8x32xf32>
    %156 = math.tanh %155 : vector<8x32xf32>
    %cst_31 = arith.constant 1.000000e+00 : f32
    %157 = vector.broadcast %cst_31 : f32 to vector<8x32xf32>
    %158 = arith.subf %157, %149 : vector<8x32xf32>
    %159 = arith.mulf %158, %156 : vector<8x32xf32>
    %160 = arith.mulf %149, %127 : vector<8x32xf32>
    %161 = arith.addf %159, %160 : vector<8x32xf32>
    %162 = arith.addi %6, %c3_i32 : i32
    %163 = vector.broadcast %162 : i32 to vector<8x1xi32>
    %164 = arith.cmpi slt, %163, %3 : vector<8x1xi32>
    %165 = vector.shape_cast %164 : vector<8x1xi1> to vector<8x1xi1>
    %166 = vector.broadcast %165 : vector<8x1xi1> to vector<8x32xi1>
    %167 = arith.select %166, %161, %127 : vector<8x32xi1>, vector<8x32xf32>
    %c4_i32 = arith.constant 4 : i32
    %168 = arith.index_cast %c4_i32 : i32 to index
    %c0_32 = arith.constant 0 : index
    %c0_33 = arith.constant 0 : index
    %169 = vector.load %arg3[%168, %c0_32, %c0_33] : memref<8x8x96xbf16, #tpu.memory_space<vmem>>, vector<1x8x96xbf16>
    %170 = vector.shape_cast %169 : vector<1x8x96xbf16> to vector<8x96xbf16>
    %171 = arith.extf %170 : vector<8x96xbf16> to vector<8x96xf32>
    %172 = arith.truncf %167 : vector<8x32xf32> to vector<8x32xbf16>
    %cst_34 = arith.constant dense<0.000000e+00> : vector<8x96xf32>
    %173 = tpu.matmul %172, %4, %cst_34 {dimension_numbers = #tpu.dot_dimension_numbers<[1], [0], [0], [1], [0, 0, 1, 1], [], []>} : vector<8x32xbf16>, vector<32x96xbf16>, vector<8x96xf32> -> vector<8x96xf32>
    %174 = vector.extract_strided_slice %171 {offsets = [0, 0], sizes = [8, 32], strides = [1, 1]} : vector<8x96xf32> to vector<8x32xf32>
    %175 = vector.extract_strided_slice %173 {offsets = [0, 0], sizes = [8, 32], strides = [1, 1]} : vector<8x96xf32> to vector<8x32xf32>
    %176 = arith.addf %174, %175 : vector<8x32xf32>
    %177 = arith.negf %176 : vector<8x32xf32>
    %178 = math.exp %177 : vector<8x32xf32>
    %cst_35 = arith.constant 1.000000e+00 : f32
    %179 = vector.broadcast %cst_35 : f32 to vector<8x32xf32>
    %180 = arith.addf %179, %178 : vector<8x32xf32>
    %181 = arith.divf %179, %180 : vector<8x32xf32>
    %182 = vector.extract_strided_slice %171 {offsets = [0, 32], sizes = [8, 32], strides = [1, 1]} : vector<8x96xf32> to vector<8x32xf32>
    %183 = vector.extract_strided_slice %173 {offsets = [0, 32], sizes = [8, 32], strides = [1, 1]} : vector<8x96xf32> to vector<8x32xf32>
    %184 = arith.addf %182, %183 : vector<8x32xf32>
    %185 = arith.negf %184 : vector<8x32xf32>
    %186 = math.exp %185 : vector<8x32xf32>
    %cst_36 = arith.constant 1.000000e+00 : f32
    %187 = vector.broadcast %cst_36 : f32 to vector<8x32xf32>
    %188 = arith.addf %187, %186 : vector<8x32xf32>
    %189 = arith.divf %187, %188 : vector<8x32xf32>
    %190 = vector.extract_strided_slice %171 {offsets = [0, 64], sizes = [8, 32], strides = [1, 1]} : vector<8x96xf32> to vector<8x32xf32>
    %191 = vector.extract_strided_slice %173 {offsets = [0, 64], sizes = [8, 32], strides = [1, 1]} : vector<8x96xf32> to vector<8x32xf32>
    %192 = vector.broadcast %5 : vector<1x32xf32> to vector<8x32xf32>
    %193 = arith.addf %191, %192 : vector<8x32xf32>
    %194 = arith.mulf %181, %193 : vector<8x32xf32>
    %195 = arith.addf %190, %194 : vector<8x32xf32>
    %196 = math.tanh %195 : vector<8x32xf32>
    %cst_37 = arith.constant 1.000000e+00 : f32
    %197 = vector.broadcast %cst_37 : f32 to vector<8x32xf32>
    %198 = arith.subf %197, %189 : vector<8x32xf32>
    %199 = arith.mulf %198, %196 : vector<8x32xf32>
    %200 = arith.mulf %189, %167 : vector<8x32xf32>
    %201 = arith.addf %199, %200 : vector<8x32xf32>
    %202 = arith.addi %6, %c4_i32 : i32
    %203 = vector.broadcast %202 : i32 to vector<8x1xi32>
    %204 = arith.cmpi slt, %203, %3 : vector<8x1xi32>
    %205 = vector.shape_cast %204 : vector<8x1xi1> to vector<8x1xi1>
    %206 = vector.broadcast %205 : vector<8x1xi1> to vector<8x32xi1>
    %207 = arith.select %206, %201, %167 : vector<8x32xi1>, vector<8x32xf32>
    %c5_i32 = arith.constant 5 : i32
    %208 = arith.index_cast %c5_i32 : i32 to index
    %c0_38 = arith.constant 0 : index
    %c0_39 = arith.constant 0 : index
    %209 = vector.load %arg3[%208, %c0_38, %c0_39] : memref<8x8x96xbf16, #tpu.memory_space<vmem>>, vector<1x8x96xbf16>
    %210 = vector.shape_cast %209 : vector<1x8x96xbf16> to vector<8x96xbf16>
    %211 = arith.extf %210 : vector<8x96xbf16> to vector<8x96xf32>
    %212 = arith.truncf %207 : vector<8x32xf32> to vector<8x32xbf16>
    %cst_40 = arith.constant dense<0.000000e+00> : vector<8x96xf32>
    %213 = tpu.matmul %212, %4, %cst_40 {dimension_numbers = #tpu.dot_dimension_numbers<[1], [0], [0], [1], [0, 0, 1, 1], [], []>} : vector<8x32xbf16>, vector<32x96xbf16>, vector<8x96xf32> -> vector<8x96xf32>
    %214 = vector.extract_strided_slice %211 {offsets = [0, 0], sizes = [8, 32], strides = [1, 1]} : vector<8x96xf32> to vector<8x32xf32>
    %215 = vector.extract_strided_slice %213 {offsets = [0, 0], sizes = [8, 32], strides = [1, 1]} : vector<8x96xf32> to vector<8x32xf32>
    %216 = arith.addf %214, %215 : vector<8x32xf32>
    %217 = arith.negf %216 : vector<8x32xf32>
    %218 = math.exp %217 : vector<8x32xf32>
    %cst_41 = arith.constant 1.000000e+00 : f32
    %219 = vector.broadcast %cst_41 : f32 to vector<8x32xf32>
    %220 = arith.addf %219, %218 : vector<8x32xf32>
    %221 = arith.divf %219, %220 : vector<8x32xf32>
    %222 = vector.extract_strided_slice %211 {offsets = [0, 32], sizes = [8, 32], strides = [1, 1]} : vector<8x96xf32> to vector<8x32xf32>
    %223 = vector.extract_strided_slice %213 {offsets = [0, 32], sizes = [8, 32], strides = [1, 1]} : vector<8x96xf32> to vector<8x32xf32>
    %224 = arith.addf %222, %223 : vector<8x32xf32>
    %225 = arith.negf %224 : vector<8x32xf32>
    %226 = math.exp %225 : vector<8x32xf32>
    %cst_42 = arith.constant 1.000000e+00 : f32
    %227 = vector.broadcast %cst_42 : f32 to vector<8x32xf32>
    %228 = arith.addf %227, %226 : vector<8x32xf32>
    %229 = arith.divf %227, %228 : vector<8x32xf32>
    %230 = vector.extract_strided_slice %211 {offsets = [0, 64], sizes = [8, 32], strides = [1, 1]} : vector<8x96xf32> to vector<8x32xf32>
    %231 = vector.extract_strided_slice %213 {offsets = [0, 64], sizes = [8, 32], strides = [1, 1]} : vector<8x96xf32> to vector<8x32xf32>
    %232 = vector.broadcast %5 : vector<1x32xf32> to vector<8x32xf32>
    %233 = arith.addf %231, %232 : vector<8x32xf32>
    %234 = arith.mulf %221, %233 : vector<8x32xf32>
    %235 = arith.addf %230, %234 : vector<8x32xf32>
    %236 = math.tanh %235 : vector<8x32xf32>
    %cst_43 = arith.constant 1.000000e+00 : f32
    %237 = vector.broadcast %cst_43 : f32 to vector<8x32xf32>
    %238 = arith.subf %237, %229 : vector<8x32xf32>
    %239 = arith.mulf %238, %236 : vector<8x32xf32>
    %240 = arith.mulf %229, %207 : vector<8x32xf32>
    %241 = arith.addf %239, %240 : vector<8x32xf32>
    %242 = arith.addi %6, %c5_i32 : i32
    %243 = vector.broadcast %242 : i32 to vector<8x1xi32>
    %244 = arith.cmpi slt, %243, %3 : vector<8x1xi32>
    %245 = vector.shape_cast %244 : vector<8x1xi1> to vector<8x1xi1>
    %246 = vector.broadcast %245 : vector<8x1xi1> to vector<8x32xi1>
    %247 = arith.select %246, %241, %207 : vector<8x32xi1>, vector<8x32xf32>
    %c6_i32 = arith.constant 6 : i32
    %248 = arith.index_cast %c6_i32 : i32 to index
    %c0_44 = arith.constant 0 : index
    %c0_45 = arith.constant 0 : index
    %249 = vector.load %arg3[%248, %c0_44, %c0_45] : memref<8x8x96xbf16, #tpu.memory_space<vmem>>, vector<1x8x96xbf16>
    %250 = vector.shape_cast %249 : vector<1x8x96xbf16> to vector<8x96xbf16>
    %251 = arith.extf %250 : vector<8x96xbf16> to vector<8x96xf32>
    %252 = arith.truncf %247 : vector<8x32xf32> to vector<8x32xbf16>
    %cst_46 = arith.constant dense<0.000000e+00> : vector<8x96xf32>
    %253 = tpu.matmul %252, %4, %cst_46 {dimension_numbers = #tpu.dot_dimension_numbers<[1], [0], [0], [1], [0, 0, 1, 1], [], []>} : vector<8x32xbf16>, vector<32x96xbf16>, vector<8x96xf32> -> vector<8x96xf32>
    %254 = vector.extract_strided_slice %251 {offsets = [0, 0], sizes = [8, 32], strides = [1, 1]} : vector<8x96xf32> to vector<8x32xf32>
    %255 = vector.extract_strided_slice %253 {offsets = [0, 0], sizes = [8, 32], strides = [1, 1]} : vector<8x96xf32> to vector<8x32xf32>
    %256 = arith.addf %254, %255 : vector<8x32xf32>
    %257 = arith.negf %256 : vector<8x32xf32>
    %258 = math.exp %257 : vector<8x32xf32>
    %cst_47 = arith.constant 1.000000e+00 : f32
    %259 = vector.broadcast %cst_47 : f32 to vector<8x32xf32>
    %260 = arith.addf %259, %258 : vector<8x32xf32>
    %261 = arith.divf %259, %260 : vector<8x32xf32>
    %262 = vector.extract_strided_slice %251 {offsets = [0, 32], sizes = [8, 32], strides = [1, 1]} : vector<8x96xf32> to vector<8x32xf32>
    %263 = vector.extract_strided_slice %253 {offsets = [0, 32], sizes = [8, 32], strides = [1, 1]} : vector<8x96xf32> to vector<8x32xf32>
    %264 = arith.addf %262, %263 : vector<8x32xf32>
    %265 = arith.negf %264 : vector<8x32xf32>
    %266 = math.exp %265 : vector<8x32xf32>
    %cst_48 = arith.constant 1.000000e+00 : f32
    %267 = vector.broadcast %cst_48 : f32 to vector<8x32xf32>
    %268 = arith.addf %267, %266 : vector<8x32xf32>
    %269 = arith.divf %267, %268 : vector<8x32xf32>
    %270 = vector.extract_strided_slice %251 {offsets = [0, 64], sizes = [8, 32], strides = [1, 1]} : vector<8x96xf32> to vector<8x32xf32>
    %271 = vector.extract_strided_slice %253 {offsets = [0, 64], sizes = [8, 32], strides = [1, 1]} : vector<8x96xf32> to vector<8x32xf32>
    %272 = vector.broadcast %5 : vector<1x32xf32> to vector<8x32xf32>
    %273 = arith.addf %271, %272 : vector<8x32xf32>
    %274 = arith.mulf %261, %273 : vector<8x32xf32>
    %275 = arith.addf %270, %274 : vector<8x32xf32>
    %276 = math.tanh %275 : vector<8x32xf32>
    %cst_49 = arith.constant 1.000000e+00 : f32
    %277 = vector.broadcast %cst_49 : f32 to vector<8x32xf32>
    %278 = arith.subf %277, %269 : vector<8x32xf32>
    %279 = arith.mulf %278, %276 : vector<8x32xf32>
    %280 = arith.mulf %269, %247 : vector<8x32xf32>
    %281 = arith.addf %279, %280 : vector<8x32xf32>
    %282 = arith.addi %6, %c6_i32 : i32
    %283 = vector.broadcast %282 : i32 to vector<8x1xi32>
    %284 = arith.cmpi slt, %283, %3 : vector<8x1xi32>
    %285 = vector.shape_cast %284 : vector<8x1xi1> to vector<8x1xi1>
    %286 = vector.broadcast %285 : vector<8x1xi1> to vector<8x32xi1>
    %287 = arith.select %286, %281, %247 : vector<8x32xi1>, vector<8x32xf32>
    %c7_i32 = arith.constant 7 : i32
    %288 = arith.index_cast %c7_i32 : i32 to index
    %c0_50 = arith.constant 0 : index
    %c0_51 = arith.constant 0 : index
    %289 = vector.load %arg3[%288, %c0_50, %c0_51] : memref<8x8x96xbf16, #tpu.memory_space<vmem>>, vector<1x8x96xbf16>
    %290 = vector.shape_cast %289 : vector<1x8x96xbf16> to vector<8x96xbf16>
    %291 = arith.extf %290 : vector<8x96xbf16> to vector<8x96xf32>
    %292 = arith.truncf %287 : vector<8x32xf32> to vector<8x32xbf16>
    %cst_52 = arith.constant dense<0.000000e+00> : vector<8x96xf32>
    %293 = tpu.matmul %292, %4, %cst_52 {dimension_numbers = #tpu.dot_dimension_numbers<[1], [0], [0], [1], [0, 0, 1, 1], [], []>} : vector<8x32xbf16>, vector<32x96xbf16>, vector<8x96xf32> -> vector<8x96xf32>
    %294 = vector.extract_strided_slice %291 {offsets = [0, 0], sizes = [8, 32], strides = [1, 1]} : vector<8x96xf32> to vector<8x32xf32>
    %295 = vector.extract_strided_slice %293 {offsets = [0, 0], sizes = [8, 32], strides = [1, 1]} : vector<8x96xf32> to vector<8x32xf32>
    %296 = arith.addf %294, %295 : vector<8x32xf32>
    %297 = arith.negf %296 : vector<8x32xf32>
    %298 = math.exp %297 : vector<8x32xf32>
    %cst_53 = arith.constant 1.000000e+00 : f32
    %299 = vector.broadcast %cst_53 : f32 to vector<8x32xf32>
    %300 = arith.addf %299, %298 : vector<8x32xf32>
    %301 = arith.divf %299, %300 : vector<8x32xf32>
    %302 = vector.extract_strided_slice %291 {offsets = [0, 32], sizes = [8, 32], strides = [1, 1]} : vector<8x96xf32> to vector<8x32xf32>
    %303 = vector.extract_strided_slice %293 {offsets = [0, 32], sizes = [8, 32], strides = [1, 1]} : vector<8x96xf32> to vector<8x32xf32>
    %304 = arith.addf %302, %303 : vector<8x32xf32>
    %305 = arith.negf %304 : vector<8x32xf32>
    %306 = math.exp %305 : vector<8x32xf32>
    %cst_54 = arith.constant 1.000000e+00 : f32
    %307 = vector.broadcast %cst_54 : f32 to vector<8x32xf32>
    %308 = arith.addf %307, %306 : vector<8x32xf32>
    %309 = arith.divf %307, %308 : vector<8x32xf32>
    %310 = vector.extract_strided_slice %291 {offsets = [0, 64], sizes = [8, 32], strides = [1, 1]} : vector<8x96xf32> to vector<8x32xf32>
    %311 = vector.extract_strided_slice %293 {offsets = [0, 64], sizes = [8, 32], strides = [1, 1]} : vector<8x96xf32> to vector<8x32xf32>
    %312 = vector.broadcast %5 : vector<1x32xf32> to vector<8x32xf32>
    %313 = arith.addf %311, %312 : vector<8x32xf32>
    %314 = arith.mulf %301, %313 : vector<8x32xf32>
    %315 = arith.addf %310, %314 : vector<8x32xf32>
    %316 = math.tanh %315 : vector<8x32xf32>
    %cst_55 = arith.constant 1.000000e+00 : f32
    %317 = vector.broadcast %cst_55 : f32 to vector<8x32xf32>
    %318 = arith.subf %317, %309 : vector<8x32xf32>
    %319 = arith.mulf %318, %316 : vector<8x32xf32>
    %320 = arith.mulf %309, %287 : vector<8x32xf32>
    %321 = arith.addf %319, %320 : vector<8x32xf32>
    %322 = arith.addi %6, %c7_i32 : i32
    %323 = vector.broadcast %322 : i32 to vector<8x1xi32>
    %324 = arith.cmpi slt, %323, %3 : vector<8x1xi32>
    %325 = vector.shape_cast %324 : vector<8x1xi1> to vector<8x1xi1>
    %326 = vector.broadcast %325 : vector<8x1xi1> to vector<8x32xi1>
    %327 = arith.select %326, %321, %287 : vector<8x32xi1>, vector<8x32xf32>
    %c8_i32_56 = arith.constant 8 : i32
    %c0_57 = arith.constant 0 : index
    %c0_58 = arith.constant 0 : index
    %328 = vector.load %arg11[%c0_57, %c0_58] : memref<8x32xf32, #tpu.memory_space<vmem>>, vector<8x32xf32>
    tpu.vector_store %arg11[%c0_57, %c0_58], %327 {strides = array<i32>} : memref<8x32xf32, #tpu.memory_space<vmem>>, vector<8x32xf32>,
    %c0_i32_59 = arith.constant 0 : i32
    %329 = arith.cmpi eq, %arg1, %c0_i32_59 : i32
    %330 = arith.extui %329 : i1 to i32
    %c0_i32_60 = arith.constant 0 : i32
    %331 = arith.cmpi ne, %330, %c0_i32_60 : i32
    scf.if %331 {
      %332 = arith.truncf %327 : vector<8x32xf32> to vector<8x32xbf16>
      %c0_61 = arith.constant 0 : index
      %c0_62 = arith.constant 0 : index
      %333 = vector.load %arg6[%c0_61, %c0_62] : memref<32x128xbf16, #tpu.memory_space<vmem>>, vector<32x128xbf16>
      %cst_63 = arith.constant dense<0.000000e+00> : vector<8x128xf32>
      %334 = tpu.matmul %332, %333, %cst_63 {dimension_numbers = #tpu.dot_dimension_numbers<[1], [0], [0], [1], [0, 0, 1, 1], [], []>} : vector<8x32xbf16>, vector<32x128xbf16>, vector<8x128xf32> -> vector<8x128xf32>
      %c0_64 = arith.constant 0 : index
      %c0_65 = arith.constant 0 : index
      %335 = vector.load %arg7[%c0_64, %c0_65] : memref<1x128xf32, #tpu.memory_space<vmem>>, vector<1x128xf32>
      %336 = vector.broadcast %335 : vector<1x128xf32> to vector<8x128xf32>
      %337 = arith.addf %334, %336 : vector<8x128xf32>
      %cst_66 = arith.constant 0.000000e+00 : f32
      %338 = vector.broadcast %cst_66 : f32 to vector<8x128xf32>
      %339 = arith.maximumf %337, %338 : vector<8x128xf32>
      %340 = arith.truncf %339 : vector<8x128xf32> to vector<8x128xbf16>
      %c0_67 = arith.constant 0 : index
      %c0_68 = arith.constant 0 : index
      %341 = vector.load %arg8[%c0_67, %c0_68] : memref<128x128xbf16, #tpu.memory_space<vmem>>, vector<128x128xbf16>
      %cst_69 = arith.constant dense<0.000000e+00> : vector<8x128xf32>
      %342 = tpu.matmul %340, %341, %cst_69 {dimension_numbers = #tpu.dot_dimension_numbers<[1], [0], [0], [1], [0, 0, 1, 1], [], []>} : vector<8x128xbf16>, vector<128x128xbf16>, vector<8x128xf32> -> vector<8x128xf32>
      %c0_70 = arith.constant 0 : index
      %c0_71 = arith.constant 0 : index
      %343 = vector.load %arg9[%c0_70, %c0_71] : memref<1x128xf32, #tpu.memory_space<vmem>>, vector<1x128xf32>
      %344 = vector.broadcast %343 : vector<1x128xf32> to vector<8x128xf32>
      %345 = arith.addf %342, %344 : vector<8x128xf32>
      %c0_72 = arith.constant 0 : index
      %c0_73 = arith.constant 0 : index
      %346 = vector.load %arg10[%c0_72, %c0_73] : memref<8x128xf32, #tpu.memory_space<vmem>>, vector<8x128xf32>
      tpu.vector_store %arg10[%c0_72, %c0_73], %345 {strides = array<i32>} : memref<8x128xf32, #tpu.memory_space<vmem>>, vector<8x128xf32>,
    } else {
    }
    return
  }
  func.func @transform_0(%arg0: i32, %arg1: i32) -> (i32, i32) {
    %c0_i32 = arith.constant 0 : i32
    %c0_i32_0 = arith.constant 0 : i32
    return %arg0, %c0_i32 : i32, i32
  }
  func.func @transform_1(%arg0: i32, %arg1: i32) -> (i32, i32, i32) {
    %c0_i32 = arith.constant 0 : i32
    %c0_i32_0 = arith.constant 0 : i32
    return %arg1, %arg0, %c0_i32 : i32, i32, i32
  }
  func.func @transform_2(%arg0: i32, %arg1: i32) -> (i32, i32) {
    %c0_i32 = arith.constant 0 : i32
    %c0_i32_0 = arith.constant 0 : i32
    %c0_i32_1 = arith.constant 0 : i32
    return %c0_i32, %c0_i32_0 : i32, i32
  }
  func.func @transform_3(%arg0: i32, %arg1: i32) -> (i32, i32) {
    %c0_i32 = arith.constant 0 : i32
    %c0_i32_0 = arith.constant 0 : i32
    %c0_i32_1 = arith.constant 0 : i32
    return %c0_i32, %c0_i32_0 : i32, i32
  }
  func.func @transform_4(%arg0: i32, %arg1: i32) -> (i32, i32) {
    %c0_i32 = arith.constant 0 : i32
    %c0_i32_0 = arith.constant 0 : i32
    %c0_i32_1 = arith.constant 0 : i32
    return %c0_i32, %c0_i32_0 : i32, i32
  }
  func.func @transform_5(%arg0: i32, %arg1: i32) -> (i32, i32) {
    %c0_i32 = arith.constant 0 : i32
    %c0_i32_0 = arith.constant 0 : i32
    %c0_i32_1 = arith.constant 0 : i32
    return %c0_i32, %c0_i32_0 : i32, i32
  }
  func.func @transform_6(%arg0: i32, %arg1: i32) -> (i32, i32) {
    %c0_i32 = arith.constant 0 : i32
    %c0_i32_0 = arith.constant 0 : i32
    %c0_i32_1 = arith.constant 0 : i32
    return %c0_i32, %c0_i32_0 : i32, i32
  }
  func.func @transform_7(%arg0: i32, %arg1: i32) -> (i32, i32) {
    %c0_i32 = arith.constant 0 : i32
    %c0_i32_0 = arith.constant 0 : i32
    %c0_i32_1 = arith.constant 0 : i32
    return %c0_i32, %c0_i32_0 : i32, i32
  }
  func.func @transform_8(%arg0: i32, %arg1: i32) -> (i32, i32) {
    %c0_i32 = arith.constant 0 : i32
    %c0_i32_0 = arith.constant 0 : i32
    return %arg0, %c0_i32 : i32, i32
  }
}

</mosaic_0001>

<llo_original>
// kernel: tpu_custom_call.1
$region0: #{tpu_custom_call.1}
  #allocation0 [shape = 'u32[]', space=smem, size = 0x4, offset = 0x4, fixed_abs, tag = 'smem constant byte address 0x4 - core index']
  #allocation1 [shape = 'u32[144,128]{1,0:T(1,128)}', space=vmem, size = 0x12000, scoped, tag = 'internal scratch']
  #allocation2 [shape = 'f32[8,32]{1,0:T(8,128)}', space=vmem, size = 0x1000, scoped, tag = 'scratch operand']
  %s0 = inlined_call_operand.vmem [shape: s32[8,1], index: 0, kind: input, shape index: {}]
  %s1 = inlined_call_operand.hbm [shape: bf16[8,8,96], index: 1, kind: input, shape index: {}]
  %s2 = inlined_call_operand.vmem [shape: bf16[32,96], index: 2, kind: input, shape index: {}]
  %s3 = inlined_call_operand.vmem [shape: f32[1,32], index: 3, kind: input, shape index: {}]
  %s4 = inlined_call_operand.hbm [shape: bf16[32,128], index: 4, kind: input, shape index: {}]
  %s5 = inlined_call_operand.vmem [shape: f32[1,128], index: 5, kind: input, shape index: {}]
  %s6 = inlined_call_operand.hbm [shape: bf16[128,128], index: 6, kind: input, shape index: {}]
  %s7 = inlined_call_operand.vmem [shape: f32[1,128], index: 7, kind: input, shape index: {}]
  %s8 = inlined_call_operand.hbm [shape: f32[8,128], index: 8, kind: output, shape index: {}]
  %s9 = sld [smem:[#allocation0]]
  $region62: #{tpu_custom_call.1} parent=0
    _
  %s11 = ssub.s32 1, %s9
  %s12 = scalar_select 0, %s11, %s9
  $region1: #{tpu_custom_call.1} parent=0
    #allocation3 [shape = 'u8[16384]{0}', space=vmem, size = 0x4000, scoped, tag = 'input window, operand 1, single buffered']
    #allocation4 [shape = 's32[1]{0}', space=sflag, size = 0x4, scoped, tag = 'scoped memory for tpu_custom_call.1']
    #allocation5 [shape = 's32[1]{0}', space=sflag, size = 0x4, scoped, tag = 'scoped memory for tpu_custom_call.1']
    #allocation6 [shape = 'u8[8192]{0}', space=vmem, size = 0x2000, scoped, tag = 'input window, operand 4, single buffered']
    #allocation7 [shape = 's32[1]{0}', space=sflag, size = 0x4, scoped, tag = 'scoped memory for tpu_custom_call.1']
    #allocation8 [shape = 'u8[32768]{0}', space=vmem, size = 0x8000, scoped, tag = 'input window, operand 6, single buffered']
    #allocation9 [shape = 'u8[4096]{0}', space=vmem, size = 0x1000, scoped, tag = 'output window, operand 0, single buffered']
    %13 = vsyncpa [#allocation4], 0
    %14 = vsyncpa [#allocation7], 0
    %15 = vsyncpa [#allocation5], 0
    // Predicated region
    $region2: #{tpu_custom_call.1} parent=1 // pred_check
      _
    $region3: #{tpu_custom_call.1} parent=1 // pred_check_branch
      %17 = sbr.rel (0) target = $region5
    $region4: #{tpu_custom_call.1} parent=1 // pred_region
      _
    $region5: #{tpu_custom_call.1} parent=1 // pred_fallthru
      _
    // Predicated region
    $region6: #{tpu_custom_call.1} parent=1 // pred_check
      _
    $region7: #{tpu_custom_call.1} parent=1 // pred_check_branch
      %19 = sbr.rel (0) target = $region9
    $region8: #{tpu_custom_call.1} parent=1 // pred_region
      %s21 = ssub.s32 512, 512
      %22 = vsyncadd [#allocation4], %s21
      %s23 = sshll.u32 [#allocation3], 4
      %s24 = int_to_ptr.vmem [resolvable:$true] %s23
      %29 = dma.hbm_to_vmem [thread:$0]  %s1, 512, %s24, [#allocation4], 64, 64, 4
    $region9: #{tpu_custom_call.1} parent=1 // pred_fallthru
      _
    // Predicated region
    $region10: #{tpu_custom_call.1} parent=1 // pred_check
      _
    $region11: #{tpu_custom_call.1} parent=1 // pred_check_branch
      %31 = sbr.rel (0) target = $region13
    $region12: #{tpu_custom_call.1} parent=1 // pred_region
      _
    $region13: #{tpu_custom_call.1} parent=1 // pred_fallthru
      _
    // Predicated region
    $region14: #{tpu_custom_call.1} parent=1 // pred_check
      _
    $region15: #{tpu_custom_call.1} parent=1 // pred_check_branch
      %33 = sbr.rel (0) target = $region17
    $region16: #{tpu_custom_call.1} parent=1 // pred_region
      _
    $region17: #{tpu_custom_call.1} parent=1 // pred_fallthru
      _
    // Predicated region
    $region18: #{tpu_custom_call.1} parent=1 // pred_check
      _
    $region19: #{tpu_custom_call.1} parent=1 // pred_check_branch
      %35 = sbr.rel (0) target = $region21
    $region20: #{tpu_custom_call.1} parent=1 // pred_region
      %s37 = ssub.s32 256, 256
      %38 = vsyncadd [#allocation7], %s37
      %s39 = sshll.u32 [#allocation6], 4
      %s40 = int_to_ptr.vmem [resolvable:$true] %s39
      %45 = dma.hbm_to_vmem [thread:$0]  %s4, 256, %s40, [#allocation7], 64, 64, 4
    $region21: #{tpu_custom_call.1} parent=1 // pred_fallthru
      _
    // Predicated region
    $region22: #{tpu_custom_call.1} parent=1 // pred_check
      _
    $region23: #{tpu_custom_call.1} parent=1 // pred_check_branch
      %47 = sbr.rel (0) target = $region25
    $region24: #{tpu_custom_call.1} parent=1 // pred_region
      _
    $region25: #{tpu_custom_call.1} parent=1 // pred_fallthru
      _
    // Predicated region
    $region26: #{tpu_custom_call.1} parent=1 // pred_check
      _
    $region27: #{tpu_custom_call.1} parent=1 // pred_check_branch
      %49 = sbr.rel (0) target = $region29
    $region28: #{tpu_custom_call.1} parent=1 // pred_region
      %s51 = ssub.s32 1024, 1024
      %52 = vsyncadd [#allocation7], %s51
      %s53 = sshll.u32 [#allocation8], 4
      %s54 = int_to_ptr.vmem [resolvable:$true] %s53
      %59 = dma.hbm_to_vmem [thread:$0]  %s6, 1024, %s54, [#allocation7], 64, 64, 4
    $region29: #{tpu_custom_call.1} parent=1 // pred_fallthru
      _
    // Predicated region
    $region30: #{tpu_custom_call.1} parent=1 // pred_check
      _
    $region31: #{tpu_custom_call.1} parent=1 // pred_check_branch
      %61 = sbr.rel (0) target = $region33
    $region32: #{tpu_custom_call.1} parent=1 // pred_region
      _
    $region33: #{tpu_custom_call.1} parent=1 // pred_fallthru
      _
    // Predicated region
    $region34: #{tpu_custom_call.1} parent=1 // pred_check
      _
    $region35: #{tpu_custom_call.1} parent=1 // pred_check_branch
      %63 = sbr.rel (0) target = $region37
    $region36: #{tpu_custom_call.1} parent=1 // pred_region
      %64 = dma.done [#allocation4], 512
    $region37: #{tpu_custom_call.1} parent=1 // pred_fallthru
      _
    // Predicated region
    $region38: #{tpu_custom_call.1} parent=1 // pred_check
      _
    $region39: #{tpu_custom_call.1} parent=1 // pred_check_branch
      %66 = sbr.rel (0) target = $region41
    $region40: #{tpu_custom_call.1} parent=1 // pred_region
      %67 = dma.done [#allocation7], 256
    $region41: #{tpu_custom_call.1} parent=1 // pred_fallthru
      _
    // Predicated region
    $region42: #{tpu_custom_call.1} parent=1 // pred_check
      _
    $region43: #{tpu_custom_call.1} parent=1 // pred_check_branch
      %69 = sbr.rel (0) target = $region45
    $region44: #{tpu_custom_call.1} parent=1 // pred_region
      %70 = dma.done [#allocation7], 1024
    $region45: #{tpu_custom_call.1} parent=1 // pred_fallthru
      _
    %p72 = scmp.eq.s32.totalorder 0, 0
    // Predicated region
    $region46: #{tpu_custom_call.1} parent=1 // pred_check
      %p73 = pneg %p72
    $region47: #{tpu_custom_call.1} parent=1 // pred_check_branch
      %75 = sbr.rel (%p73) target = $region49
    $region48: #{tpu_custom_call.1} parent=1 // pred_region
      %vm76 = vcmask 261120
      %77 = vst.msk [vmem:[#allocation2] sm:$0xff] %vm76, 0.0
    $region49: #{tpu_custom_call.1} parent=1 // pred_fallthru
      _
    %v78 = vld [vmem:[%s0] sm:$0xff]
    %v79 = vld [vmem:[%s2] sm:$0xf]
    %v80 = vld [vmem:[%s2 + $0x4] sm:$0xf]
    %v81 = vld [vmem:[%s2 + $0x8] sm:$0xf]
    %v82 = vld [vmem:[%s2 + $0xc] sm:$0xf]
    %v83 = vld [vmem:[%s3] sm:$0x1]
    %s84 = smul.u32 0, 8
    %v85 = vld [vmem:[#allocation2] sm:$0xff]
    %v86 = vld [vmem:[#allocation3] sm:$0xf]
    %v87 = vunpack.c.l.bf16 %v86
    %v88 = vpack.c.bf16 %v85, %v85
    %v93 = vunpack.c.l.b16 %v79
    %v94 = vunpack.c.l.b16 %v80
    %v95 = vunpack.c.l.b16 %v81
    %v96 = vunpack.c.l.b16 %v82
    %v97 = vpack.c.b16 %v94, %v93
    %v98 = vpack.c.b16 %v96, %v95
    %vm101 = vcmask 261120
    %v103 = vsel %vm101, %v88, 0
    %105 = vmatprep.subr.bf16.mxu0 0
    %106 = vmatpush1.bf16.msra.mxu0 %v97
    %107 = vmatprep.subr.bf16.mxu0 0
    %108 = vmatpush1.bf16.msra.mxu0 %v98
    %109 = vmatprep.subr.bf16.mxu0 0
    %110 = vmatpush1.bf16.msra.mxu0 0
    %111 = vmatprep.subr.bf16.mxu0 0
    %112 = vmatpush1.bf16.msra.mxu0 0
    %113 = vmatprep.subr.bf16.mxu0 0
    %114 = vmatpush1.bf16.msra.mxu0 0
    %115 = vmatprep.subr.bf16.mxu0 0
    %116 = vmatpush1.bf16.msra.mxu0 0
    %117 = vmatprep.subr.bf16.mxu0 0
    %118 = vmatpush1.bf16.msra.mxu0 0
    %119 = vmatprep.subr.bf16.mxu0 0
    %120 = vmatpush1.bf16.msra.mxu0 0
    %121 = vmatprep.subr.bf16.mxu0 0
    %122 = vmatpush1.bf16.msra.mxu0 0
    %123 = vmatprep.subr.bf16.mxu0 0
    %124 = vmatpush1.bf16.msra.mxu0 0
    %125 = vmatprep.subr.bf16.mxu0 0
    %126 = vmatpush1.bf16.msra.mxu0 0
    %127 = vmatprep.subr.bf16.mxu0 0
    %128 = vmatpush1.bf16.msra.mxu0 0
    %129 = vmatprep.subr.bf16.mxu0 0
    %130 = vmatpush1.bf16.msra.mxu0 0
    %131 = vmatprep.subr.bf16.mxu0 0
    %132 = vmatpush1.bf16.msra.mxu0 0
    %133 = vmatprep.subr.bf16.mxu0 0
    %134 = vmatpush1.bf16.msra.mxu0 0
    %135 = vmatprep.subr.bf16.mxu0 0
    %136 = vmatpush1.bf16.msra.mxu0 0
    %137 = vmatprep.mubr.bf16.mxu0 0
    %138 = vmatmul.mubr.bf16.gmra.mrb[0].mxu0 %v103
    %v139 = vpop.f32.mrb[0].mxu0
    %v140 = vadd.f32 0.0, %v139
    %v141 = vpop.f32.mrb[0].mxu0
    %v142 = vpop.f32.mrb[0].mxu0
    %v143 = vpop.f32.mrb[0].mxu0
    %144 = vdwg.mxu0
    %v145 = vadd.f32 %v87, %v140
    %v146 = vxor.u32 %v145, 2147483648
    %v147 = vmul.f32 %v146, 1.442695
    %v148 = vpow.pop %v147
    %v149 = vadd.f32 %v148, 1.0
    %v150 = vrcp.pop %v149
    %v151 = vmul.f32 1.0, %v150
    %v153 = vlaneseq
    %v154 = vshrl.u32 %v153, 7
    %v155 = vsub.s32 0, %v154
    %v156 = vrot.slane %v83, %v155
    %157 = vrot.lane.b32.xlu0 %v156, 64
    %v158 = vpop.permute.xlu0 %157
    %v160 = vadd.f32 %v140, %v158
    %162 = vrot.lane.b32.xlu0 %v160, 64
    %v163 = vpop.permute.xlu0 %162
    %v165 = vmul.f32 %v151, %v163
    %167 = vrot.lane.b32.xlu0 %v165, 64
    %v168 = vpop.permute.xlu0 %167
    %v170 = vadd.f32 %v87, %v168
    %v171 = vtanh.pop %v170
    %v172 = vsub.f32 1.0, %v151
    %174 = vrot.lane.b32.xlu0 %v171, 96
    %v175 = vpop.permute.xlu0 %174
    %v177 = vmul.f32 %v172, %v175
    %179 = vrot.lane.b32.xlu0 %v85, 32
    %v180 = vpop.permute.xlu0 %179
    %v182 = vmul.f32 %v151, %v180
    %v183 = vadd.f32 %v177, %v182
    %v184 = vstv %s84
    %vm185 = vcmp.lt.s32.totalorder %v184, %v78
    %v186 = vsel %vm185, 1, 0
    %187 = vset.pattern.permute.xlu0 0
    %188 = vperm.xlu0 %187, %v186
    %v189 = vpop.permute.xlu0 %188
    %vm190 = vcmp.eq.s32.totalorder %v189, 1
    %v191 = vsel %vm190, %v183, %v180
    %s192 = scalar_lea.vmem [#allocation3], 4
    %v193 = vld [vmem:[%s192] sm:$0xf]
    %v194 = vunpack.c.l.bf16 %v193
    %v195 = vpack.c.bf16 %v191, %v191
    %197 = vrot.lane.b32.xlu0 %v195, 96
    %v198 = vpop.permute.xlu0 %197
    %v200 = vsel %vm101, %v198, 0
    %202 = vmatprep.subr.bf16.mxu0 0
    %203 = vmatpush1.bf16.msra.mxu0 %v97
    %204 = vmatprep.subr.bf16.mxu0 0
    %205 = vmatpush1.bf16.msra.mxu0 %v98
    %206 = vmatprep.subr.bf16.mxu0 0
    %207 = vmatpush1.bf16.msra.mxu0 0
    %208 = vmatprep.subr.bf16.mxu0 0
    %209 = vmatpush1.bf16.msra.mxu0 0
    %210 = vmatprep.subr.bf16.mxu0 0
    %211 = vmatpush1.bf16.msra.mxu0 0
    %212 = vmatprep.subr.bf16.mxu0 0
    %213 = vmatpush1.bf16.msra.mxu0 0
    %214 = vmatprep.subr.bf16.mxu0 0
    %215 = vmatpush1.bf16.msra.mxu0 0
    %216 = vmatprep.subr.bf16.mxu0 0
    %217 = vmatpush1.bf16.msra.mxu0 0
    %218 = vmatprep.subr.bf16.mxu0 0
    %219 = vmatpush1.bf16.msra.mxu0 0
    %220 = vmatprep.subr.bf16.mxu0 0
    %221 = vmatpush1.bf16.msra.mxu0 0
    %222 = vmatprep.subr.bf16.mxu0 0
    %223 = vmatpush1.bf16.msra.mxu0 0
    %224 = vmatprep.subr.bf16.mxu0 0
    %225 = vmatpush1.bf16.msra.mxu0 0
    %226 = vmatprep.subr.bf16.mxu0 0
    %227 = vmatpush1.bf16.msra.mxu0 0
    %228 = vmatprep.subr.bf16.mxu0 0
    %229 = vmatpush1.bf16.msra.mxu0 0
    %230 = vmatprep.subr.bf16.mxu0 0
    %231 = vmatpush1.bf16.msra.mxu0 0
    %232 = vmatprep.subr.bf16.mxu0 0
    %233 = vmatpush1.bf16.msra.mxu0 0
    %234 = vmatprep.mubr.bf16.mxu0 0
    %235 = vmatmul.mubr.bf16.gmra.mrb[0].mxu0 %v200
    %v236 = vpop.f32.mrb[0].mxu0
    %v237 = vadd.f32 0.0, %v236
    %v238 = vpop.f32.mrb[0].mxu0
    %v239 = vpop.f32.mrb[0].mxu0
    %v240 = vpop.f32.mrb[0].mxu0
    %241 = vdwg.mxu0
    %v242 = vadd.f32 %v194, %v237
    %v243 = vxor.u32 %v242, 2147483648
    %v244 = vmul.f32 %v243, 1.442695
    %v245 = vpow.pop %v244
    %v246 = vadd.f32 %v245, 1.0
    %v247 = vrcp.pop %v246
    %v248 = vmul.f32 1.0, %v247
    %v249 = vadd.f32 %v237, %v158
    %251 = vrot.lane.b32.xlu0 %v249, 64
    %v252 = vpop.permute.xlu0 %251
    %v254 = vmul.f32 %v248, %v252
    %256 = vrot.lane.b32.xlu0 %v254, 64
    %v257 = vpop.permute.xlu0 %256
    %v259 = vadd.f32 %v194, %v257
    %v260 = vtanh.pop %v259
    %v261 = vsub.f32 1.0, %v248
    %263 = vrot.lane.b32.xlu0 %v260, 96
    %v264 = vpop.permute.xlu0 %263
    %v266 = vmul.f32 %v261, %v264
    %v267 = vmul.f32 %v248, %v191
    %v268 = vadd.f32 %v266, %v267
    %s269 = sadd.s32 %s84, 1
    %v270 = vstv %s269
    %vm271 = vcmp.lt.s32.totalorder %v270, %v78
    %v272 = vsel %vm271, 1, 0
    %273 = vset.pattern.permute.xlu0 0
    %274 = vperm.xlu0 %273, %v272
    %v275 = vpop.permute.xlu0 %274
    %vm276 = vcmp.eq.s32.totalorder %v275, 1
    %v277 = vsel %vm276, %v268, %v191
    %s278 = scalar_lea.vmem [#allocation3], 8
    %v279 = vld [vmem:[%s278] sm:$0xf]
    %v280 = vunpack.c.l.bf16 %v279
    %v281 = vpack.c.bf16 %v277, %v277
    %283 = vrot.lane.b32.xlu0 %v281, 96
    %v284 = vpop.permute.xlu0 %283
    %v286 = vsel %vm101, %v284, 0
    %288 = vmatprep.subr.bf16.mxu0 0
    %289 = vmatpush1.bf16.msra.mxu0 %v97
    %290 = vmatprep.subr.bf16.mxu0 0
    %291 = vmatpush1.bf16.msra.mxu0 %v98
    %292 = vmatprep.subr.bf16.mxu0 0
    %293 = vmatpush1.bf16.msra.mxu0 0
    %294 = vmatprep.subr.bf16.mxu0 0
    %295 = vmatpush1.bf16.msra.mxu0 0
    %296 = vmatprep.subr.bf16.mxu0 0
    %297 = vmatpush1.bf16.msra.mxu0 0
    %298 = vmatprep.subr.bf16.mxu0 0
    %299 = vmatpush1.bf16.msra.mxu0 0
    %300 = vmatprep.subr.bf16.mxu0 0
    %301 = vmatpush1.bf16.msra.mxu0 0
    %302 = vmatprep.subr.bf16.mxu0 0
    %303 = vmatpush1.bf16.msra.mxu0 0
    %304 = vmatprep.subr.bf16.mxu0 0
    %305 = vmatpush1.bf16.msra.mxu0 0
    %306 = vmatprep.subr.bf16.mxu0 0
    %307 = vmatpush1.bf16.msra.mxu0 0
    %308 = vmatprep.subr.bf16.mxu0 0
    %309 = vmatpush1.bf16.msra.mxu0 0
    %310 = vmatprep.subr.bf16.mxu0 0
    %311 = vmatpush1.bf16.msra.mxu0 0
    %312 = vmatprep.subr.bf16.mxu0 0
    %313 = vmatpush1.bf16.msra.mxu0 0
    %314 = vmatprep.subr.bf16.mxu0 0
    %315 = vmatpush1.bf16.msra.mxu0 0
    %316 = vmatprep.subr.bf16.mxu0 0
    %317 = vmatpush1.bf16.msra.mxu0 0
    %318 = vmatprep.subr.bf16.mxu0 0
    %319 = vmatpush1.bf16.msra.mxu0 0
    %320 = vmatprep.mubr.bf16.mxu0 0
    %321 = vmatmul.mubr.bf16.gmra.mrb[0].mxu0 %v286
    %v322 = vpop.f32.mrb[0].mxu0
    %v323 = vadd.f32 0.0, %v322
    %v324 = vpop.f32.mrb[0].mxu0
    %v325 = vpop.f32.mrb[0].mxu0
    %v326 = vpop.f32.mrb[0].mxu0
    %327 = vdwg.mxu0
    %v328 = vadd.f32 %v280, %v323
    %v329 = vxor.u32 %v328, 2147483648
    %v330 = vmul.f32 %v329, 1.442695
    %v331 = vpow.pop %v330
    %v332 = vadd.f32 %v331, 1.0
    %v333 = vrcp.pop %v332
    %v334 = vmul.f32 1.0, %v333
    %v335 = vadd.f32 %v323, %v158
    %337 = vrot.lane.b32.xlu0 %v335, 64
    %v338 = vpop.permute.xlu0 %337
    %v340 = vmul.f32 %v334, %v338
    %342 = vrot.lane.b32.xlu0 %v340, 64
    %v343 = vpop.permute.xlu0 %342
    %v345 = vadd.f32 %v280, %v343
    %v346 = vtanh.pop %v345
    %v347 = vsub.f32 1.0, %v334
    %349 = vrot.lane.b32.xlu0 %v346, 96
    %v350 = vpop.permute.xlu0 %349
    %v352 = vmul.f32 %v347, %v350
    %v353 = vmul.f32 %v334, %v277
    %v354 = vadd.f32 %v352, %v353
    %s355 = sadd.s32 %s84, 2
    %v356 = vstv %s355
    %vm357 = vcmp.lt.s32.totalorder %v356, %v78
    %v358 = vsel %vm357, 1, 0
    %359 = vset.pattern.permute.xlu0 0
    %360 = vperm.xlu0 %359, %v358
    %v361 = vpop.permute.xlu0 %360
    %vm362 = vcmp.eq.s32.totalorder %v361, 1
    %v363 = vsel %vm362, %v354, %v277
    %s364 = scalar_lea.vmem [#allocation3], 12
    %v365 = vld [vmem:[%s364] sm:$0xf]
    %v366 = vunpack.c.l.bf16 %v365
    %v367 = vpack.c.bf16 %v363, %v363
    %369 = vrot.lane.b32.xlu0 %v367, 96
    %v370 = vpop.permute.xlu0 %369
    %v372 = vsel %vm101, %v370, 0
    %374 = vmatprep.subr.bf16.mxu0 0
    %375 = vmatpush1.bf16.msra.mxu0 %v97
    %376 = vmatprep.subr.bf16.mxu0 0
    %377 = vmatpush1.bf16.msra.mxu0 %v98
    %378 = vmatprep.subr.bf16.mxu0 0
    %379 = vmatpush1.bf16.msra.mxu0 0
    %380 = vmatprep.subr.bf16.mxu0 0
    %381 = vmatpush1.bf16.msra.mxu0 0
    %382 = vmatprep.subr.bf16.mxu0 0
    %383 = vmatpush1.bf16.msra.mxu0 0
    %384 = vmatprep.subr.bf16.mxu0 0
    %385 = vmatpush1.bf16.msra.mxu0 0
    %386 = vmatprep.subr.bf16.mxu0 0
    %387 = vmatpush1.bf16.msra.mxu0 0
    %388 = vmatprep.subr.bf16.mxu0 0
    %389 = vmatpush1.bf16.msra.mxu0 0
    %390 = vmatprep.subr.bf16.mxu0 0
    %391 = vmatpush1.bf16.msra.mxu0 0
    %392 = vmatprep.subr.bf16.mxu0 0
    %393 = vmatpush1.bf16.msra.mxu0 0
    %394 = vmatprep.subr.bf16.mxu0 0
    %395 = vmatpush1.bf16.msra.mxu0 0
    %396 = vmatprep.subr.bf16.mxu0 0
    %397 = vmatpush1.bf16.msra.mxu0 0
    %398 = vmatprep.subr.bf16.mxu0 0
    %399 = vmatpush1.bf16.msra.mxu0 0
    %400 = vmatprep.subr.bf16.mxu0 0
    %401 = vmatpush1.bf16.msra.mxu0 0
    %402 = vmatprep.subr.bf16.mxu0 0
    %403 = vmatpush1.bf16.msra.mxu0 0
    %404 = vmatprep.subr.bf16.mxu0 0
    %405 = vmatpush1.bf16.msra.mxu0 0
    %406 = vmatprep.mubr.bf16.mxu0 0
    %407 = vmatmul.mubr.bf16.gmra.mrb[0].mxu0 %v372
    %v408 = vpop.f32.mrb[0].mxu0
    %v409 = vadd.f32 0.0, %v408
    %v410 = vpop.f32.mrb[0].mxu0
    %v411 = vpop.f32.mrb[0].mxu0
    %v412 = vpop.f32.mrb[0].mxu0
    %413 = vdwg.mxu0
    %v414 = vadd.f32 %v366, %v409
    %v415 = vxor.u32 %v414, 2147483648
    %v416 = vmul.f32 %v415, 1.442695
    %v417 = vpow.pop %v416
    %v418 = vadd.f32 %v417, 1.0
    %v419 = vrcp.pop %v418
    %v420 = vmul.f32 1.0, %v419
    %v421 = vadd.f32 %v409, %v158
    %423 = vrot.lane.b32.xlu0 %v421, 64
    %v424 = vpop.permute.xlu0 %423
    %v426 = vmul.f32 %v420, %v424
    %428 = vrot.lane.b32.xlu0 %v426, 64
    %v429 = vpop.permute.xlu0 %428
    %v431 = vadd.f32 %v366, %v429
    %v432 = vtanh.pop %v431
    %v433 = vsub.f32 1.0, %v420
    %435 = vrot.lane.b32.xlu0 %v432, 96
    %v436 = vpop.permute.xlu0 %435
    %v438 = vmul.f32 %v433, %v436
    %v439 = vmul.f32 %v420, %v363
    %v440 = vadd.f32 %v438, %v439
    %s441 = sadd.s32 %s84, 3
    %v442 = vstv %s441
    %vm443 = vcmp.lt.s32.totalorder %v442, %v78
    %v444 = vsel %vm443, 1, 0
    %445 = vset.pattern.permute.xlu0 0
    %446 = vperm.xlu0 %445, %v444
    %v447 = vpop.permute.xlu0 %446
    %vm448 = vcmp.eq.s32.totalorder %v447, 1
    %v449 = vsel %vm448, %v440, %v363
    %s450 = scalar_lea.vmem [#allocation3], 16
    %v451 = vld [vmem:[%s450] sm:$0xf]
    %v452 = vunpack.c.l.bf16 %v451
    %v453 = vpack.c.bf16 %v449, %v449
    %455 = vrot.lane.b32.xlu0 %v453, 96
    %v456 = vpop.permute.xlu0 %455
    %v458 = vsel %vm101, %v456, 0
    %460 = vmatprep.subr.bf16.mxu0 0
    %461 = vmatpush1.bf16.msra.mxu0 %v97
    %462 = vmatprep.subr.bf16.mxu0 0
    %463 = vmatpush1.bf16.msra.mxu0 %v98
    %464 = vmatprep.subr.bf16.mxu0 0
    %465 = vmatpush1.bf16.msra.mxu0 0
    %466 = vmatprep.subr.bf16.mxu0 0
    %467 = vmatpush1.bf16.msra.mxu0 0
    %468 = vmatprep.subr.bf16.mxu0 0
    %469 = vmatpush1.bf16.msra.mxu0 0
    %470 = vmatprep.subr.bf16.mxu0 0
    %471 = vmatpush1.bf16.msra.mxu0 0
    %472 = vmatprep.subr.bf16.mxu0 0
    %473 = vmatpush1.bf16.msra.mxu0 0
    %474 = vmatprep.subr.bf16.mxu0 0
    %475 = vmatpush1.bf16.msra.mxu0 0
    %476 = vmatprep.subr.bf16.mxu0 0
    %477 = vmatpush1.bf16.msra.mxu0 0
    %478 = vmatprep.subr.bf16.mxu0 0
    %479 = vmatpush1.bf16.msra.mxu0 0
    %480 = vmatprep.subr.bf16.mxu0 0
    %481 = vmatpush1.bf16.msra.mxu0 0
    %482 = vmatprep.subr.bf16.mxu0 0
    %483 = vmatpush1.bf16.msra.mxu0 0
    %484 = vmatprep.subr.bf16.mxu0 0
    %485 = vmatpush1.bf16.msra.mxu0 0
    %486 = vmatprep.subr.bf16.mxu0 0
    %487 = vmatpush1.bf16.msra.mxu0 0
    %488 = vmatprep.subr.bf16.mxu0 0
    %489 = vmatpush1.bf16.msra.mxu0 0
    %490 = vmatprep.subr.bf16.mxu0 0
    %491 = vmatpush1.bf16.msra.mxu0 0
    %492 = vmatprep.mubr.bf16.mxu0 0
    %493 = vmatmul.mubr.bf16.gmra.mrb[0].mxu0 %v458
    %v494 = vpop.f32.mrb[0].mxu0
    %v495 = vadd.f32 0.0, %v494
    %v496 = vpop.f32.mrb[0].mxu0
    %v497 = vpop.f32.mrb[0].mxu0
    %v498 = vpop.f32.mrb[0].mxu0
    %499 = vdwg.mxu0
    %v500 = vadd.f32 %v452, %v495
    %v501 = vxor.u32 %v500, 2147483648
    %v502 = vmul.f32 %v501, 1.442695
    %v503 = vpow.pop %v502
    %v504 = vadd.f32 %v503, 1.0
    %v505 = vrcp.pop %v504
    %v506 = vmul.f32 1.0, %v505
    %v507 = vadd.f32 %v495, %v158
    %509 = vrot.lane.b32.xlu0 %v507, 64
    %v510 = vpop.permute.xlu0 %509
    %v512 = vmul.f32 %v506, %v510
    %514 = vrot.lane.b32.xlu0 %v512, 64
    %v515 = vpop.permute.xlu0 %514
    %v517 = vadd.f32 %v452, %v515
    %v518 = vtanh.pop %v517
    %v519 = vsub.f32 1.0, %v506
    %521 = vrot.lane.b32.xlu0 %v518, 96
    %v522 = vpop.permute.xlu0 %521
    %v524 = vmul.f32 %v519, %v522
    %v525 = vmul.f32 %v506, %v449
    %v526 = vadd.f32 %v524, %v525
    %s527 = sadd.s32 %s84, 4
    %v528 = vstv %s527
    %vm529 = vcmp.lt.s32.totalorder %v528, %v78
    %v530 = vsel %vm529, 1, 0
    %531 = vset.pattern.permute.xlu0 0
    %532 = vperm.xlu0 %531, %v530
    %v533 = vpop.permute.xlu0 %532
    %vm534 = vcmp.eq.s32.totalorder %v533, 1
    %v535 = vsel %vm534, %v526, %v449
    %s536 = scalar_lea.vmem [#allocation3], 20
    %v537 = vld [vmem:[%s536] sm:$0xf]
    %v538 = vunpack.c.l.bf16 %v537
    %v539 = vpack.c.bf16 %v535, %v535
    %541 = vrot.lane.b32.xlu0 %v539, 96
    %v542 = vpop.permute.xlu0 %541
    %v544 = vsel %vm101, %v542, 0
    %546 = vmatprep.subr.bf16.mxu0 0
    %547 = vmatpush1.bf16.msra.mxu0 %v97
    %548 = vmatprep.subr.bf16.mxu0 0
    %549 = vmatpush1.bf16.msra.mxu0 %v98
    %550 = vmatprep.subr.bf16.mxu0 0
    %551 = vmatpush1.bf16.msra.mxu0 0
    %552 = vmatprep.subr.bf16.mxu0 0
    %553 = vmatpush1.bf16.msra.mxu0 0
    %554 = vmatprep.subr.bf16.mxu0 0
    %555 = vmatpush1.bf16.msra.mxu0 0
    %556 = vmatprep.subr.bf16.mxu0 0
    %557 = vmatpush1.bf16.msra.mxu0 0
    %558 = vmatprep.subr.bf16.mxu0 0
    %559 = vmatpush1.bf16.msra.mxu0 0
    %560 = vmatprep.subr.bf16.mxu0 0
    %561 = vmatpush1.bf16.msra.mxu0 0
    %562 = vmatprep.subr.bf16.mxu0 0
    %563 = vmatpush1.bf16.msra.mxu0 0
    %564 = vmatprep.subr.bf16.mxu0 0
    %565 = vmatpush1.bf16.msra.mxu0 0
    %566 = vmatprep.subr.bf16.mxu0 0
    %567 = vmatpush1.bf16.msra.mxu0 0
    %568 = vmatprep.subr.bf16.mxu0 0
    %569 = vmatpush1.bf16.msra.mxu0 0
    %570 = vmatprep.subr.bf16.mxu0 0
    %571 = vmatpush1.bf16.msra.mxu0 0
    %572 = vmatprep.subr.bf16.mxu0 0
    %573 = vmatpush1.bf16.msra.mxu0 0
    %574 = vmatprep.subr.bf16.mxu0 0
    %575 = vmatpush1.bf16.msra.mxu0 0
    %576 = vmatprep.subr.bf16.mxu0 0
    %577 = vmatpush1.bf16.msra.mxu0 0
    %578 = vmatprep.mubr.bf16.mxu0 0
    %579 = vmatmul.mubr.bf16.gmra.mrb[0].mxu0 %v544
    %v580 = vpop.f32.mrb[0].mxu0
    %v581 = vadd.f32 0.0, %v580
    %v582 = vpop.f32.mrb[0].mxu0
    %v583 = vpop.f32.mrb[0].mxu0
    %v584 = vpop.f32.mrb[0].mxu0
    %585 = vdwg.mxu0
    %v586 = vadd.f32 %v538, %v581
    %v587 = vxor.u32 %v586, 2147483648
    %v588 = vmul.f32 %v587, 1.442695
    %v589 = vpow.pop %v588
    %v590 = vadd.f32 %v589, 1.0
    %v591 = vrcp.pop %v590
    %v592 = vmul.f32 1.0, %v591
    %v593 = vadd.f32 %v581, %v158
    %595 = vrot.lane.b32.xlu0 %v593, 64
    %v596 = vpop.permute.xlu0 %595
    %v598 = vmul.f32 %v592, %v596
    %600 = vrot.lane.b32.xlu0 %v598, 64
    %v601 = vpop.permute.xlu0 %600
    %v603 = vadd.f32 %v538, %v601
    %v604 = vtanh.pop %v603
    %v605 = vsub.f32 1.0, %v592
    %607 = vrot.lane.b32.xlu0 %v604, 96
    %v608 = vpop.permute.xlu0 %607
    %v610 = vmul.f32 %v605, %v608
    %v611 = vmul.f32 %v592, %v535
    %v612 = vadd.f32 %v610, %v611
    %s613 = sadd.s32 %s84, 5
    %v614 = vstv %s613
    %vm615 = vcmp.lt.s32.totalorder %v614, %v78
    %v616 = vsel %vm615, 1, 0
    %617 = vset.pattern.permute.xlu0 0
    %618 = vperm.xlu0 %617, %v616
    %v619 = vpop.permute.xlu0 %618
    %vm620 = vcmp.eq.s32.totalorder %v619, 1
    %v621 = vsel %vm620, %v612, %v535
    %s622 = scalar_lea.vmem [#allocation3], 24
    %v623 = vld [vmem:[%s622] sm:$0xf]
    %v624 = vunpack.c.l.bf16 %v623
    %v625 = vpack.c.bf16 %v621, %v621
    %627 = vrot.lane.b32.xlu0 %v625, 96
    %v628 = vpop.permute.xlu0 %627
    %v630 = vsel %vm101, %v628, 0
    %632 = vmatprep.subr.bf16.mxu0 0
    %633 = vmatpush1.bf16.msra.mxu0 %v97
    %634 = vmatprep.subr.bf16.mxu0 0
    %635 = vmatpush1.bf16.msra.mxu0 %v98
    %636 = vmatprep.subr.bf16.mxu0 0
    %637 = vmatpush1.bf16.msra.mxu0 0
    %638 = vmatprep.subr.bf16.mxu0 0
    %639 = vmatpush1.bf16.msra.mxu0 0
    %640 = vmatprep.subr.bf16.mxu0 0
    %641 = vmatpush1.bf16.msra.mxu0 0
    %642 = vmatprep.subr.bf16.mxu0 0
    %643 = vmatpush1.bf16.msra.mxu0 0
    %644 = vmatprep.subr.bf16.mxu0 0
    %645 = vmatpush1.bf16.msra.mxu0 0
    %646 = vmatprep.subr.bf16.mxu0 0
    %647 = vmatpush1.bf16.msra.mxu0 0
    %648 = vmatprep.subr.bf16.mxu0 0
    %649 = vmatpush1.bf16.msra.mxu0 0
    %650 = vmatprep.subr.bf16.mxu0 0
    %651 = vmatpush1.bf16.msra.mxu0 0
    %652 = vmatprep.subr.bf16.mxu0 0
    %653 = vmatpush1.bf16.msra.mxu0 0
    %654 = vmatprep.subr.bf16.mxu0 0
    %655 = vmatpush1.bf16.msra.mxu0 0
    %656 = vmatprep.subr.bf16.mxu0 0
    %657 = vmatpush1.bf16.msra.mxu0 0
    %658 = vmatprep.subr.bf16.mxu0 0
    %659 = vmatpush1.bf16.msra.mxu0 0
    %660 = vmatprep.subr.bf16.mxu0 0
    %661 = vmatpush1.bf16.msra.mxu0 0
    %662 = vmatprep.subr.bf16.mxu0 0
    %663 = vmatpush1.bf16.msra.mxu0 0
    %664 = vmatprep.mubr.bf16.mxu0 0
    %665 = vmatmul.mubr.bf16.gmra.mrb[0].mxu0 %v630
    %v666 = vpop.f32.mrb[0].mxu0
    %v667 = vadd.f32 0.0, %v666
    %v668 = vpop.f32.mrb[0].mxu0
    %v669 = vpop.f32.mrb[0].mxu0
    %v670 = vpop.f32.mrb[0].mxu0
    %671 = vdwg.mxu0
    %v672 = vadd.f32 %v624, %v667
    %v673 = vxor.u32 %v672, 2147483648
    %v674 = vmul.f32 %v673, 1.442695
    %v675 = vpow.pop %v674
    %v676 = vadd.f32 %v675, 1.0
    %v677 = vrcp.pop %v676
    %v678 = vmul.f32 1.0, %v677
    %v679 = vadd.f32 %v667, %v158
    %681 = vrot.lane.b32.xlu0 %v679, 64
    %v682 = vpop.permute.xlu0 %681
    %v684 = vmul.f32 %v678, %v682
    %686 = vrot.lane.b32.xlu0 %v684, 64
    %v687 = vpop.permute.xlu0 %686
    %v689 = vadd.f32 %v624, %v687
    %v690 = vtanh.pop %v689
    %v691 = vsub.f32 1.0, %v678
    %693 = vrot.lane.b32.xlu0 %v690, 96
    %v694 = vpop.permute.xlu0 %693
    %v696 = vmul.f32 %v691, %v694
    %v697 = vmul.f32 %v678, %v621
    %v698 = vadd.f32 %v696, %v697
    %s699 = sadd.s32 %s84, 6
    %v700 = vstv %s699
    %vm701 = vcmp.lt.s32.totalorder %v700, %v78
    %v702 = vsel %vm701, 1, 0
    %703 = vset.pattern.permute.xlu0 0
    %704 = vperm.xlu0 %703, %v702
    %v705 = vpop.permute.xlu0 %704
    %vm706 = vcmp.eq.s32.totalorder %v705, 1
    %v707 = vsel %vm706, %v698, %v621
    %s708 = scalar_lea.vmem [#allocation3], 28
    %v709 = vld [vmem:[%s708] sm:$0xf]
    %v710 = vunpack.c.l.bf16 %v709
    %v711 = vpack.c.bf16 %v707, %v707
    %713 = vrot.lane.b32.xlu0 %v711, 96
    %v714 = vpop.permute.xlu0 %713
    %v716 = vsel %vm101, %v714, 0
    %718 = vmatprep.subr.bf16.mxu0 0
    %719 = vmatpush1.bf16.msra.mxu0 %v97
    %720 = vmatprep.subr.bf16.mxu0 0
    %721 = vmatpush1.bf16.msra.mxu0 %v98
    %722 = vmatprep.subr.bf16.mxu0 0
    %723 = vmatpush1.bf16.msra.mxu0 0
    %724 = vmatprep.subr.bf16.mxu0 0
    %725 = vmatpush1.bf16.msra.mxu0 0
    %726 = vmatprep.subr.bf16.mxu0 0
    %727 = vmatpush1.bf16.msra.mxu0 0
    %728 = vmatprep.subr.bf16.mxu0 0
    %729 = vmatpush1.bf16.msra.mxu0 0
    %730 = vmatprep.subr.bf16.mxu0 0
    %731 = vmatpush1.bf16.msra.mxu0 0
    %732 = vmatprep.subr.bf16.mxu0 0
    %733 = vmatpush1.bf16.msra.mxu0 0
    %734 = vmatprep.subr.bf16.mxu0 0
    %735 = vmatpush1.bf16.msra.mxu0 0
    %736 = vmatprep.subr.bf16.mxu0 0
    %737 = vmatpush1.bf16.msra.mxu0 0
    %738 = vmatprep.subr.bf16.mxu0 0
    %739 = vmatpush1.bf16.msra.mxu0 0
    %740 = vmatprep.subr.bf16.mxu0 0
    %741 = vmatpush1.bf16.msra.mxu0 0
    %742 = vmatprep.subr.bf16.mxu0 0
    %743 = vmatpush1.bf16.msra.mxu0 0
    %744 = vmatprep.subr.bf16.mxu0 0
    %745 = vmatpush1.bf16.msra.mxu0 0
    %746 = vmatprep.subr.bf16.mxu0 0
    %747 = vmatpush1.bf16.msra.mxu0 0
    %748 = vmatprep.subr.bf16.mxu0 0
    %749 = vmatpush1.bf16.msra.mxu0 0
    %750 = vmatprep.mubr.bf16.mxu0 0
    %751 = vmatmul.mubr.bf16.gmra.mrb[0].mxu0 %v716
    %v752 = vpop.f32.mrb[0].mxu0
    %v753 = vadd.f32 0.0, %v752
    %v754 = vpop.f32.mrb[0].mxu0
    %v755 = vpop.f32.mrb[0].mxu0
    %v756 = vpop.f32.mrb[0].mxu0
    %757 = vdwg.mxu0
    %v758 = vadd.f32 %v710, %v753
    %v759 = vxor.u32 %v758, 2147483648
    %v760 = vmul.f32 %v759, 1.442695
    %v761 = vpow.pop %v760
    %v762 = vadd.f32 %v761, 1.0
    %v763 = vrcp.pop %v762
    %v764 = vmul.f32 1.0, %v763
    %v765 = vadd.f32 %v753, %v158
    %767 = vrot.lane.b32.xlu0 %v765, 64
    %v768 = vpop.permute.xlu0 %767
    %v770 = vmul.f32 %v764, %v768
    %772 = vrot.lane.b32.xlu0 %v770, 64
    %v773 = vpop.permute.xlu0 %772
    %v775 = vadd.f32 %v710, %v773
    %v776 = vtanh.pop %v775
    %v777 = vsub.f32 1.0, %v764
    %779 = vrot.lane.b32.xlu0 %v776, 96
    %v780 = vpop.permute.xlu0 %779
    %v782 = vmul.f32 %v777, %v780
    %v783 = vmul.f32 %v764, %v707
    %v784 = vadd.f32 %v782, %v783
    %s785 = sadd.s32 %s84, 7
    %v786 = vstv %s785
    %vm787 = vcmp.lt.s32.totalorder %v786, %v78
    %v788 = vsel %vm787, 1, 0
    %789 = vset.pattern.permute.xlu0 0
    %790 = vperm.xlu0 %789, %v788
    %v791 = vpop.permute.xlu0 %790
    %vm792 = vcmp.eq.s32.totalorder %v791, 1
    %v793 = vsel %vm792, %v784, %v707
    %795 = vrot.lane.b32.xlu0 %v793, 96
    %v796 = vpop.permute.xlu0 %795
    %798 = vst.msk [vmem:[#allocation2] sm:$0xff] %vm101, %v796
    // Predicated region
    $region50: #{tpu_custom_call.1} parent=1 // pred_check
      %p799 = pneg %p72
    $region51: #{tpu_custom_call.1} parent=1 // pred_check_branch
      %801 = sbr.rel (%p799) target = $region53
    $region52: #{tpu_custom_call.1} parent=1 // pred_region
      %v802 = vpack.c.bf16 %v793, %v793
      %v803 = vld [vmem:[#allocation6] sm:$0xf]
      %v804 = vld [vmem:[#allocation6 + $0x4] sm:$0xf]
      %v805 = vld [vmem:[#allocation6 + $0x8] sm:$0xf]
      %v806 = vld [vmem:[#allocation6 + $0xc] sm:$0xf]
      %v807 = vld [vmem:[%s5] sm:$0x1]
      %v809 = vlaneseq
      %v810 = vshrl.u32 %v809, 7
      %v811 = vsub.s32 0, %v810
      %v812 = vrot.slane %v807, %v811
      %815 = vrot.lane.b32.xlu0 %v802, 96
      %v816 = vpop.permute.xlu0 %815
      %v821 = vunpack.c.l.b16 %v803
      %v822 = vunpack.c.l.b16 %v804
      %v823 = vunpack.c.l.b16 %v805
      %v824 = vunpack.c.l.b16 %v806
      %v825 = vpack.c.b16 %v822, %v821
      %v826 = vpack.c.b16 %v824, %v823
      %v830 = vsel %vm101, %v816, 0
      %832 = vmatprep.subr.bf16.mxu0 0
      %833 = vmatpush1.bf16.msra.mxu0 %v825
      %834 = vmatprep.subr.bf16.mxu0 0
      %835 = vmatpush1.bf16.msra.mxu0 %v826
      %836 = vmatprep.subr.bf16.mxu0 0
      %837 = vmatpush1.bf16.msra.mxu0 0
      %838 = vmatprep.subr.bf16.mxu0 0
      %839 = vmatpush1.bf16.msra.mxu0 0
      %840 = vmatprep.subr.bf16.mxu0 0
      %841 = vmatpush1.bf16.msra.mxu0 0
      %842 = vmatprep.subr.bf16.mxu0 0
      %843 = vmatpush1.bf16.msra.mxu0 0
      %844 = vmatprep.subr.bf16.mxu0 0
      %845 = vmatpush1.bf16.msra.mxu0 0
      %846 = vmatprep.subr.bf16.mxu0 0
      %847 = vmatpush1.bf16.msra.mxu0 0
      %848 = vmatprep.subr.bf16.mxu0 0
      %849 = vmatpush1.bf16.msra.mxu0 0
      %850 = vmatprep.subr.bf16.mxu0 0
      %851 = vmatpush1.bf16.msra.mxu0 0
      %852 = vmatprep.subr.bf16.mxu0 0
      %853 = vmatpush1.bf16.msra.mxu0 0
      %854 = vmatprep.subr.bf16.mxu0 0
      %855 = vmatpush1.bf16.msra.mxu0 0
      %856 = vmatprep.subr.bf16.mxu0 0
      %857 = vmatpush1.bf16.msra.mxu0 0
      %858 = vmatprep.subr.bf16.mxu0 0
      %859 = vmatpush1.bf16.msra.mxu0 0
      %860 = vmatprep.subr.bf16.mxu0 0
      %861 = vmatpush1.bf16.msra.mxu0 0
      %862 = vmatprep.subr.bf16.mxu0 0
      %863 = vmatpush1.bf16.msra.mxu0 0
      %864 = vmatprep.mubr.bf16.mxu0 0
      %865 = vmatmul.mubr.bf16.gmra.mrb[0].mxu0 %v830
      %v866 = vpop.f32.mrb[0].mxu0
      %v867 = vadd.f32 %v812, %v866
      %v868 = vpop.f32.mrb[0].mxu0
      %v869 = vpop.f32.mrb[0].mxu0
      %v870 = vpop.f32.mrb[0].mxu0
      %871 = vdwg.mxu0
      %v872 = vmax.f32 %v867, 0.0
      %v873 = vpack.c.bf16 %v872, %v872
      %v874 = vld [vmem:[#allocation8] sm:$0xf]
      %v875 = vld [vmem:[#allocation8 + $0x4] sm:$0xf]
      %v876 = vld [vmem:[#allocation8 + $0x8] sm:$0xf]
      %v877 = vld [vmem:[#allocation8 + $0xc] sm:$0xf]
      %v878 = vld [vmem:[#allocation8 + $0x10] sm:$0xf]
      %v879 = vld [vmem:[#allocation8 + $0x14] sm:$0xf]
      %v880 = vld [vmem:[#allocation8 + $0x18] sm:$0xf]
      %v881 = vld [vmem:[#allocation8 + $0x1c] sm:$0xf]
      %v882 = vld [vmem:[#allocation8 + $0x20] sm:$0xf]
      %v883 = vld [vmem:[#allocation8 + $0x24] sm:$0xf]
      %v884 = vld [vmem:[#allocation8 + $0x28] sm:$0xf]
      %v885 = vld [vmem:[#allocation8 + $0x2c] sm:$0xf]
      %v886 = vld [vmem:[#allocation8 + $0x30] sm:$0xf]
      %v887 = vld [vmem:[#allocation8 + $0x34] sm:$0xf]
      %v888 = vld [vmem:[#allocation8 + $0x38] sm:$0xf]
      %v889 = vld [vmem:[#allocation8 + $0x3c] sm:$0xf]
      %v890 = vld [vmem:[%s7] sm:$0x1]
      %v892 = vlaneseq
      %v893 = vshrl.u32 %v892, 7
      %v894 = vsub.s32 0, %v893
      %v895 = vrot.slane %v890, %v894
      %v913 = vunpack.c.l.b16 %v874
      %v914 = vunpack.c.l.b16 %v875
      %v915 = vunpack.c.l.b16 %v876
      %v916 = vunpack.c.l.b16 %v877
      %v917 = vunpack.c.l.b16 %v878
      %v918 = vunpack.c.l.b16 %v879
      %v919 = vunpack.c.l.b16 %v880
      %v920 = vunpack.c.l.b16 %v881
      %v921 = vunpack.c.l.b16 %v882
      %v922 = vunpack.c.l.b16 %v883
      %v923 = vunpack.c.l.b16 %v884
      %v924 = vunpack.c.l.b16 %v885
      %v925 = vunpack.c.l.b16 %v886
      %v926 = vunpack.c.l.b16 %v887
      %v927 = vunpack.c.l.b16 %v888
      %v928 = vunpack.c.l.b16 %v889
      %v929 = vpack.c.b16 %v914, %v913
      %v930 = vpack.c.b16 %v916, %v915
      %v931 = vpack.c.b16 %v918, %v917
      %v932 = vpack.c.b16 %v920, %v919
      %v933 = vpack.c.b16 %v922, %v921
      %v934 = vpack.c.b16 %v924, %v923
      %v935 = vpack.c.b16 %v926, %v925
      %v936 = vpack.c.b16 %v928, %v927
      %945 = vmatprep.subr.bf16.mxu0 0
      %946 = vmatpush1.bf16.msra.mxu0 %v929
      %947 = vmatprep.subr.bf16.mxu0 0
      %948 = vmatpush1.bf16.msra.mxu0 %v930
      %949 = vmatprep.subr.bf16.mxu0 0
      %950 = vmatpush1.bf16.msra.mxu0 %v931
      %951 = vmatprep.subr.bf16.mxu0 0
      %952 = vmatpush1.bf16.msra.mxu0 %v932
      %953 = vmatprep.subr.bf16.mxu0 0
      %954 = vmatpush1.bf16.msra.mxu0 %v933
      %955 = vmatprep.subr.bf16.mxu0 0
      %956 = vmatpush1.bf16.msra.mxu0 %v934
      %957 = vmatprep.subr.bf16.mxu0 0
      %958 = vmatpush1.bf16.msra.mxu0 %v935
      %959 = vmatprep.subr.bf16.mxu0 0
      %960 = vmatpush1.bf16.msra.mxu0 %v936
      %961 = vmatprep.subr.bf16.mxu0 0
      %962 = vmatpush1.bf16.msra.mxu0 0
      %963 = vmatprep.subr.bf16.mxu0 0
      %964 = vmatpush1.bf16.msra.mxu0 0
      %965 = vmatprep.subr.bf16.mxu0 0
      %966 = vmatpush1.bf16.msra.mxu0 0
      %967 = vmatprep.subr.bf16.mxu0 0
      %968 = vmatpush1.bf16.msra.mxu0 0
      %969 = vmatprep.subr.bf16.mxu0 0
      %970 = vmatpush1.bf16.msra.mxu0 0
      %971 = vmatprep.subr.bf16.mxu0 0
      %972 = vmatpush1.bf16.msra.mxu0 0
      %973 = vmatprep.subr.bf16.mxu0 0
      %974 = vmatpush1.bf16.msra.mxu0 0
      %975 = vmatprep.subr.bf16.mxu0 0
      %976 = vmatpush1.bf16.msra.mxu0 0
      %977 = vmatprep.mubr.bf16.mxu0 0
      %978 = vmatmul.mubr.bf16.gmra.mrb[0].mxu0 %v873
      %v979 = vpop.f32.mrb[0].mxu0
      %v980 = vadd.f32 %v895, %v979
      %v981 = vpop.f32.mrb[0].mxu0
      %v982 = vpop.f32.mrb[0].mxu0
      %v983 = vpop.f32.mrb[0].mxu0
      %984 = vdwg.mxu0
      %985 = vst [vmem:[#allocation9] sm:$0xff] %v980
    $region53: #{tpu_custom_call.1} parent=1 // pred_fallthru
      _
    // Predicated region
    $region54: #{tpu_custom_call.1} parent=1 // pred_check
      _
    $region55: #{tpu_custom_call.1} parent=1 // pred_check_branch
      %987 = sbr.rel (0) target = $region57
    $region56: #{tpu_custom_call.1} parent=1 // pred_region
      %s989 = ssub.s32 128, 128
      %990 = vsyncadd [#allocation5], %s989
      %s992 = sshll.u32 [#allocation9], 4
      %s993 = int_to_ptr.vmem [resolvable:$true] %s992
      %995 = dma.vmem_to_hbm [thread:$0]  %s993, 128, %s8, [#allocation5]
    $region57: #{tpu_custom_call.1} parent=1 // pred_fallthru
      _
    // Predicated region
    $region58: #{tpu_custom_call.1} parent=1 // pred_check
      _
    $region59: #{tpu_custom_call.1} parent=1 // pred_check_branch
      %997 = sbr.rel (0) target = $region61
    $region60: #{tpu_custom_call.1} parent=1 // pred_region
      %998 = dma.done [#allocation5], 128
    $region61: #{tpu_custom_call.1} parent=1 // pred_fallthru
      _
    %999 = vsyncpa [#allocation4], 1
    %1000 = vsyncpa [#allocation7], 1
    %1001 = vsyncpa [#allocation5], 1

</llo_original>
